<compile_context>
chip_gen: v6e
topology: v6e:2x2x1
jax: 0.10.0
libtpu: 0.0.40
codegen_flags: <defaults>
</compile_context>

<pallas_src>
import jax
import jax.numpy as jnp
from jax import lax
from jax.experimental import pallas as pl
from jax.experimental.pallas import tpu as pltpu
from functools import partial


_LN_EPS = 1e-5


def _layernorm(x, gamma, beta):
    mu = jnp.mean(x, axis=-1, keepdims=True)
    xc = x - mu
    var = jnp.mean(xc * xc, axis=-1, keepdims=True)
    return xc * lax.rsqrt(var + _LN_EPS) * gamma + beta


def _erf(x):
    # Abramowitz & Stegun 7.1.26 polynomial approximation (|err| <= 1.5e-7).
    a1, a2, a3, a4, a5 = (0.254829592, -0.284496736, 1.421413741,
                          -1.453152027, 1.061405429)
    p = 0.3275911
    sgn = jnp.where(x >= 0.0, 1.0, -1.0)
    ax = jnp.abs(x)
    t = 1.0 / (1.0 + p * ax)
    poly = ((((a5 * t + a4) * t + a3) * t + a2) * t + a1) * t
    return sgn * (1.0 - poly * jnp.exp(-ax * ax))


def _gelu_exact(x):
    # Matches torch.nn.GELU() (erf form) to ~1e-7.
    # TODO(synk): if profiling shows the VALU is binding on v6e/v7x (small C), compute this
    #             polynomial in bf16 (2 elem/lane); kept f32 here for accuracy and v5e.
    return 0.5 * x * (1.0 + _erf(x * 0.7071067811865476))


def _fused_block_kernel(x_ref, g1_ref, b1_ref, wq_ref, wk_ref, wproj_ref,
                        bproj_ref, ech_ref, ehc_ref, g2_ref, b2_ref, w1_ref,
                        bm1_ref, w2_ref, bm2_ref, o_ref, *,
                        n_clips, pool, scale, compute_dtype, mlp_tile):
    """One batch element: x1 = x + attn(LN1(x)); out = x1 + MLP(LN2(x1)) (in-place epilogue)."""
    K, P = n_clips, pool
    C = x_ref.shape[-1]
    N = K * P
    cdt = compute_dtype
    f32 = jnp.float32

    # -------- pooled-clip attention + residual ------------------------------------------
    x = x_ref[...].astype(f32)                                      # (N, C)
    h1 = _layernorm(x, g1_ref[...], b1_ref[...])                    # norm1, f32

    # k projection (the module's `v = k.reshape(...)` makes the v half of kv dead).
    k = jnp.dot(h1.astype(cdt), wk_ref[...],
                preferred_element_type=f32)                         # (N, C)

    # Pooled q: Linear (no bias) commutes with the Hc*Wc mean -> project pooled input.
    h1_pool = jnp.mean(h1.reshape(K, P, C), axis=1)                 # (K, C)
    q_pool = jnp.dot(h1_pool.astype(cdt), wq_ref[...],
                     preferred_element_type=f32)                    # (K, C)
    k3 = k.reshape(K, P, C)
    k_pool = jnp.mean(k3, axis=1)                                   # (K, C)

    # Per-head scores over pooled clips via the hoisted one-hot reduce matrix e_ch (C, H):
    #   s[i, j, h] = scale * sum_{c in head h} q_pool[i, c] * k_pool[j, c]
    prod = q_pool[:, None, :] * k_pool[None, :, :]                  # (K, K, C) f32
    s = jnp.dot(prod.reshape(K * K, C).astype(cdt), ech_ref[...],
                preferred_element_type=f32) * scale                 # (K*K, H)
    s = s.reshape(K, K, -1)
    s = s - jnp.max(s, axis=1, keepdims=True)                       # softmax over key clips
    pexp = jnp.exp(s)
    attn = pexp * pl.reciprocal(jnp.sum(pexp, axis=1, keepdims=True),
                                approx=False)                       # (K, K, H), tiny -> exact

    # Expand attn heads to channels with e_hc (H, C): a_exp[i, j, c] = attn[i, j, head(c)].
    a_exp = jnp.dot(attn.reshape(K * K, -1).astype(cdt), ehc_ref[...],
                    preferred_element_type=f32).reshape(K, K, C)

    # Context (module sets v = k): ctx[i, p, c] = sum_j a_exp[i, j, c] * k3[j, p, c].
    # Accumulate over the key-clip axis j so the live intermediate stays at (N, C)
    # instead of materializing a (K, K, P, C) = K x (N, C) broadcast.
    ctx = a_exp[:, 0, :][:, None, :] * k3[0]                        # (K, P, C)
    for j in range(1, K):
        ctx = ctx + a_exp[:, j, :][:, None, :] * k3[j]
    ctx = ctx.reshape(N, C)

    y = jnp.dot(ctx.astype(cdt), wproj_ref[...],
                preferred_element_type=f32) + bproj_ref[...]
    o_ref[...] = (x + y).astype(o_ref.dtype)                        # x1 -> output block

    # -------- fused MLP epilogue: LayerNorm2 + fc1 + GELU + fc2 + residual, in place ----
    g2 = g2_ref[...]
    b2 = b2_ref[...]
    bm1 = bm1_ref[...]
    bm2 = bm2_ref[...]

    def _mlp_tile_update(start):
        xt = o_ref[pl.ds(start, mlp_tile), :].astype(f32)           # (tile, C)
        h = _layernorm(xt, g2, b2)
        hdn = jnp.dot(h.astype(cdt), w1_ref[...],
                      preferred_element_type=f32) + bm1             # (tile, hidden)
        act = _gelu_exact(hdn)
        m = jnp.dot(act.astype(cdt), w2_ref[...],
                    preferred_element_type=f32) + bm2               # (tile, C)
        o_ref[pl.ds(start, mlp_tile), :] = (xt + m).astype(o_ref.dtype)

    n_tiles = N // mlp_tile
    if n_tiles == 1:
        _mlp_tile_update(0)
    else:
        def _body(t, carry):
            _mlp_tile_update(pl.multiple_of(t * mlp_tile, mlp_tile))
            return carry
        lax.fori_loop(0, n_tiles, _body, 0)


def _pick_mlp_tile(n):
    # Prefer 256-row token tiles (full 256-wide MXU rows on v6e/v7x, bounded hidden act).
    for cand in (256, 128, 64, 32, 16, 8):
        if n % cand == 0:
            return cand
    return n


def block_pooling(x, size, params, *, num_heads, compute_dtype=jnp.bfloat16):
    B, N, C = x.shape
    Kc, Hc, Wc = size
    assert N == Kc * Hc * Wc, (N, size)
    assert C % num_heads == 0
    H = num_heads
    d = C // H
    P = Hc * Wc
    scale = d ** (-0.5)
    hidden = params["w1"].shape[1]
    cdt = compute_dtype
    f32 = jnp.float32

    # Exactness of the pooled-q trick and the dropped v projection relies on qkv_bias=False
    # and on the module overwriting v with k (`v = k.reshape(...)`).
    assert params["wkv"].shape == (C, 2 * C), params["wkv"].shape
    assert "bq" not in params and "bkv" not in params, "qkv_bias=False assumed"

    # Weights cast once to the MXU compute dtype (bf16 default, f32 accumulation in-kernel).
    wq = params["wq"].astype(cdt)
    wk = params["wkv"][:, :C].astype(cdt)     # only the k half of kv reaches the output
    wproj = params["wproj"].astype(cdt)
    w1 = params["w1"].astype(cdt)
    w2 = params["w2"].astype(cdt)

    g1 = params["norm1_g"].reshape(1, C).astype(f32)
    b1 = params["norm1_b"].reshape(1, C).astype(f32)
    bproj = params["bproj"].reshape(1, C).astype(f32)
    g2 = params["norm2_g"].reshape(1, C).astype(f32)
    b2 = params["norm2_b"].reshape(1, C).astype(f32)
    bm1 = params["b1"].reshape(1, hidden).astype(f32)
    bm2 = params["b2"].reshape(1, C).astype(f32)

    # Grid-invariant one-hot head reduce/expand matrices, hoisted out of the kernel.
    head_of_c = jnp.arange(C, dtype=jnp.int32) // d
    e_ch = (head_of_c[:, None] == jnp.arange(H, dtype=jnp.int32)[None, :]).astype(cdt)  # (C, H)
    e_hc = e_ch.T                                                                        # (H, C)

    mlp_tile = _pick_mlp_tile(N)

    # Explicit VMEM budget: double-buffered (N,C) I/O + double-buffered weights + live f32
    # intermediates, capped at ~85% of physical VMEM (v7x: 64 MiB; v5e/v6e: 128 MiB).
    xbytes = jnp.dtype(x.dtype).itemsize
    cbytes = jnp.dtype(cdt).itemsize
    est = (2 * 2 * N * C * xbytes
           + 2 * (3 * C * C + 2 * C * hidden) * cbytes
           + 8 * N * C * 4
           + 2 * mlp_tile * hidden * 4
           + (2 << 20))
    try:
        phys_vmem = int(pltpu.get_tpu_info().vmem_capacity_bytes)
    except Exception:
        phys_vmem = 64 * 1024 * 1024
    vmem_limit = int(min(max(2 * est, 32 * 1024 * 1024), int(phys_vmem * 0.85)))

    kernel = partial(_fused_block_kernel, n_clips=Kc, pool=P, scale=scale,
                     compute_dtype=cdt, mlp_tile=mlp_tile)
    const = lambda b: (0, 0)

    # NOTE: grid is (B,) "parallel" -> on v7x (2 TCs/chip) B >= 2 is needed for full occupancy.
    out = pl.pallas_call(
        kernel,
        out_shape=jax.ShapeDtypeStruct((B, N, C), x.dtype),
        grid_spec=pltpu.PrefetchScalarGridSpec(
            num_scalar_prefetch=0,
            grid=(B,),
            in_specs=[
                pl.BlockSpec((None, N, C), lambda b: (b, 0, 0)),   # x (batch dim squeezed)
                pl.BlockSpec((1, C), const),                       # norm1 gamma
                pl.BlockSpec((1, C), const),                       # norm1 beta
                pl.BlockSpec((C, C), const),                       # Wq
                pl.BlockSpec((C, C), const),                       # Wk (k half of Wkv)
                pl.BlockSpec((C, C), const),                       # Wproj
                pl.BlockSpec((1, C), const),                       # bproj
                pl.BlockSpec((C, H), const),                       # e_ch (head reduce)
                pl.BlockSpec((H, C), const),                       # e_hc (head expand)
                pl.BlockSpec((1, C), const),                       # norm2 gamma
                pl.BlockSpec((1, C), const),                       # norm2 beta
                pl.BlockSpec((C, hidden), const),                  # W1
                pl.BlockSpec((1, hidden), const),                  # b1
                pl.BlockSpec((hidden, C), const),                  # W2
                pl.BlockSpec((1, C), const),                       # b2
            ],
            out_specs=pl.BlockSpec((None, N, C), lambda b: (b, 0, 0)),
        ),
        compiler_params=pltpu.CompilerParams(
            dimension_semantics=("parallel",),
            vmem_limit_bytes=vmem_limit),
    )(x, g1, b1, wq, wk, wproj, bproj, e_ch, e_hc, g2, b2, w1, bm1, w2, bm2)
    return out


def block_pooling_ref(x, size, params, *, num_heads):
    """Pure-JAX reference mirroring the PyTorch forward (incl. the `v = k` quirk)."""
    B, N, C = x.shape
    Kc, Hc, Wc = size
    H = num_heads
    d = C // H
    scale = d ** (-0.5)

    def ln(v, g, b):
        mu = v.mean(-1, keepdims=True)
        var = ((v - mu) ** 2).mean(-1, keepdims=True)
        return (v - mu) / jnp.sqrt(var + _LN_EPS) * g + b

    h1 = ln(x, params["norm1_g"], params["norm1_b"])
    q = (h1 @ params["wq"]).reshape(B, N, H, d).transpose(0, 2, 1, 3)
    kv = (h1 @ params["wkv"]).reshape(B, N, 2, H, d).transpose(2, 0, 3, 1, 4)
    k = kv[0]                                    # kv[1] never reaches the output
    q = q.reshape(B, H, Kc, Hc, Wc, d).mean(axis=(3, 4))
    k6 = k.reshape(B, H, Kc, Hc, Wc, d)
    v = k6.reshape(B, H, Kc, Hc * Wc * d)        # module: v = k.reshape(...)
    k_pool = k6.mean(axis=(3, 4))
    attn = jax.nn.softmax((q @ jnp.swapaxes(k_pool, -1, -2)) * scale, axis=-1)
    o = (attn @ v).reshape(B, H, Kc, Hc, Wc, d).transpose(0, 2, 3, 4, 1, 5).reshape(B, N, C)
    x1 = x + (o @ params["wproj"] + params["bproj"])
    h2 = ln(x1, params["norm2_g"], params["norm2_b"])
    m = jax.nn.gelu(h2 @ params["w1"] + params["b1"],
                    approximate=False) @ params["w2"] + params["b2"]
    return x1 + m


def _make_params(key, C, hidden):
    ks = jax.random.split(key, 12)
    f = jnp.float32
    return dict(
        norm1_g=1.0 + 0.1 * jax.random.normal(ks[0], (C,), f),
        norm1_b=0.1 * jax.random.normal(ks[1], (C,), f),
        wq=0.1 * jax.random.normal(ks[2], (C, C), f),
        wkv=0.1 * jax.random.normal(ks[3], (C, 2 * C), f),
        wproj=0.1 * jax.random.normal(ks[4], (C, C), f),
        bproj=0.1 * jax.random.normal(ks[5], (C,), f),
        norm2_g=1.0 + 0.1 * jax.random.normal(ks[6], (C,), f),
        norm2_b=0.1 * jax.random.normal(ks[7], (C,), f),
        w1=0.1 * jax.random.normal(ks[8], (C, hidden), f),
        b1=0.1 * jax.random.normal(ks[9], (hidden,), f),
        w2=0.1 * jax.random.normal(ks[10], (hidden, C), f),
        b2=0.1 * jax.random.normal(ks[11], (C,), f),
    )


if __name__ == "__main__":
    B, C, num_heads = 2, 32, 4
    Kc, Hc, Wc = 4, 4, 4            # size = (K_clips, H_clips, W_clips)
    N = Kc * Hc * Wc                # 64 tokens
    hidden = 4 * C                  # mlp_ratio = 4.0

    key = jax.random.PRNGKey(0)
    kx, kp = jax.random.split(key)
    x = jax.random.normal(kx, (B, N, C), jnp.float32)
    params = _make_params(kp, C, hidden)

    ref = block_pooling_ref(x, (Kc, Hc, Wc), params, num_heads=num_heads)

    # f32 compute path: tight check against the reference.
    out_f32 = block_pooling(x, (Kc, Hc, Wc), params, num_heads=num_heads,
                            compute_dtype=jnp.float32)
    out_f32 = jax.block_until_ready(out_f32)
    assert out_f32.shape == (B, N, C)
    assert jnp.allclose(out_f32, ref, atol=2e-4, rtol=2e-3), \
        float(jnp.max(jnp.abs(out_f32 - ref)))

    # Default bf16 MXU path (f32 accumulation, f32 layernorm/softmax/gelu): loose sanity check.
    out = block_pooling(x, (Kc, Hc, Wc), params, num_heads=num_heads)
    out = jax.block_until_ready(out)
    assert out.shape == (B, N, C)
    assert float(jnp.max(jnp.abs(out - ref))) < 0.2

    print("KERNEL_OK")
</pallas_src>

<mosaic_0001>
module attributes {stable_mosaic.version = 11 : i64} {
  func.func @_fused_block_kernel(%arg0: i32, %arg1: memref<1x64x32xf32, #tpu.memory_space<vmem>>, %arg2: memref<1x32xf32, #tpu.memory_space<vmem>>, %arg3: memref<1x32xf32, #tpu.memory_space<vmem>>, %arg4: memref<32x32xf32, #tpu.memory_space<vmem>>, %arg5: memref<32x32xf32, #tpu.memory_space<vmem>>, %arg6: memref<32x32xf32, #tpu.memory_space<vmem>>, %arg7: memref<1x32xf32, #tpu.memory_space<vmem>>, %arg8: memref<32x4xf32, #tpu.memory_space<vmem>>, %arg9: memref<4x32xf32, #tpu.memory_space<vmem>>, %arg10: memref<1x32xf32, #tpu.memory_space<vmem>>, %arg11: memref<1x32xf32, #tpu.memory_space<vmem>>, %arg12: memref<32x128xf32, #tpu.memory_space<vmem>>, %arg13: memref<1x128xf32, #tpu.memory_space<vmem>>, %arg14: memref<128x32xf32, #tpu.memory_space<vmem>>, %arg15: memref<1x32xf32, #tpu.memory_space<vmem>>, %arg16: memref<1x64x32xf32, #tpu.memory_space<vmem>>) attributes {dimension_semantics = [#tpu.dimension_semantics<parallel>], iteration_bounds = array<i64: 2>, scalar_prefetch = 0 : i64, scratch_operands = 0 : i64, tpu.core_type = #tpu.core_type<tc>, window_params = [{transform_indices = @transform_0, window_bounds = array<i64: 1, 64, 32>}, {pipeline_mode = #tpu.pipeline_mode<synchronous>, transform_indices = @transform_1, window_bounds = array<i64: 1, 32>}, {pipeline_mode = #tpu.pipeline_mode<synchronous>, transform_indices = @transform_2, window_bounds = array<i64: 1, 32>}, {pipeline_mode = #tpu.pipeline_mode<synchronous>, transform_indices = @transform_3, window_bounds = array<i64: 32, 32>}, {pipeline_mode = #tpu.pipeline_mode<synchronous>, transform_indices = @transform_4, window_bounds = array<i64: 32, 32>}, {pipeline_mode = #tpu.pipeline_mode<synchronous>, transform_indices = @transform_5, window_bounds = array<i64: 32, 32>}, {pipeline_mode = #tpu.pipeline_mode<synchronous>, transform_indices = @transform_6, window_bounds = array<i64: 1, 32>}, {pipeline_mode = #tpu.pipeline_mode<synchronous>, transform_indices = @transform_7, window_bounds = array<i64: 32, 4>}, {pipeline_mode = #tpu.pipeline_mode<synchronous>, transform_indices = @transform_8, window_bounds = array<i64: 4, 32>}, {pipeline_mode = #tpu.pipeline_mode<synchronous>, transform_indices = @transform_9, window_bounds = array<i64: 1, 32>}, {pipeline_mode = #tpu.pipeline_mode<synchronous>, transform_indices = @transform_10, window_bounds = array<i64: 1, 32>}, {pipeline_mode = #tpu.pipeline_mode<synchronous>, transform_indices = @transform_11, window_bounds = array<i64: 32, 128>}, {pipeline_mode = #tpu.pipeline_mode<synchronous>, transform_indices = @transform_12, window_bounds = array<i64: 1, 128>}, {pipeline_mode = #tpu.pipeline_mode<synchronous>, transform_indices = @transform_13, window_bounds = array<i64: 128, 32>}, {pipeline_mode = #tpu.pipeline_mode<synchronous>, transform_indices = @transform_14, window_bounds = array<i64: 1, 32>}, {transform_indices = @transform_15, window_bounds = array<i64: 1, 64, 32>}]} {
    %c0 = arith.constant 0 : index
    %c0_0 = arith.constant 0 : index
    %c0_1 = arith.constant 0 : index
    %0 = vector.load %arg1[%c0, %c0_0, %c0_1] : memref<1x64x32xf32, #tpu.memory_space<vmem>>, vector<1x64x32xf32>
    %1 = vector.shape_cast %0 : vector<1x64x32xf32> to vector<64x32xf32>
    %c0_2 = arith.constant 0 : index
    %c0_3 = arith.constant 0 : index
    %2 = vector.load %arg2[%c0_2, %c0_3] : memref<1x32xf32, #tpu.memory_space<vmem>>, vector<1x32xf32>
    %c0_4 = arith.constant 0 : index
    %c0_5 = arith.constant 0 : index
    %3 = vector.load %arg3[%c0_4, %c0_5] : memref<1x32xf32, #tpu.memory_space<vmem>>, vector<1x32xf32>
    %cst = arith.constant dense<0.000000e+00> : vector<64xf32>
    %4 = vector.multi_reduction <add>, %1, %cst [1] : vector<64x32xf32> to vector<64xf32>
    %5 = vector.shape_cast %4 : vector<64xf32> to vector<64x1xf32>
    %cst_6 = arith.constant 3.200000e+01 : f32
    %6 = vector.broadcast %cst_6 : f32 to vector<64x1xf32>
    %7 = arith.divf %5, %6 : vector<64x1xf32>
    %8 = vector.broadcast %7 : vector<64x1xf32> to vector<64x32xf32>
    %9 = arith.subf %1, %8 : vector<64x32xf32>
    %10 = arith.mulf %9, %9 : vector<64x32xf32>
    %cst_7 = arith.constant dense<0.000000e+00> : vector<64xf32>
    %11 = vector.multi_reduction <add>, %10, %cst_7 [1] : vector<64x32xf32> to vector<64xf32>
    %12 = vector.shape_cast %11 : vector<64xf32> to vector<64x1xf32>
    %cst_8 = arith.constant 3.200000e+01 : f32
    %13 = vector.broadcast %cst_8 : f32 to vector<64x1xf32>
    %14 = arith.divf %12, %13 : vector<64x1xf32>
    %cst_9 = arith.constant 9.99999974E-6 : f32
    %15 = vector.broadcast %cst_9 : f32 to vector<64x1xf32>
    %16 = arith.addf %14, %15 : vector<64x1xf32>
    %17 = math.rsqrt %16 : vector<64x1xf32>
    %18 = vector.broadcast %17 : vector<64x1xf32> to vector<64x32xf32>
    %19 = arith.mulf %9, %18 : vector<64x32xf32>
    %20 = vector.broadcast %2 : vector<1x32xf32> to vector<64x32xf32>
    %21 = arith.mulf %19, %20 : vector<64x32xf32>
    %22 = vector.broadcast %3 : vector<1x32xf32> to vector<64x32xf32>
    %23 = arith.addf %21, %22 : vector<64x32xf32>
    %c0_10 = arith.constant 0 : index
    %c0_11 = arith.constant 0 : index
    %24 = vector.load %arg5[%c0_10, %c0_11] : memref<32x32xf32, #tpu.memory_space<vmem>>, vector<32x32xf32>
    %cst_12 = arith.constant dense<0.000000e+00> : vector<64x32xf32>
    %25 = tpu.matmul %23, %24, %cst_12 {dimension_numbers = #tpu.dot_dimension_numbers<[1], [0], [0], [1], [0, 0, 1, 1], [], []>} : vector<64x32xf32>, vector<32x32xf32>, vector<64x32xf32> -> vector<64x32xf32>
    %26 = vector.shape_cast %23 : vector<64x32xf32> to vector<4x16x32xf32>
    %cst_13 = arith.constant dense<0.000000e+00> : vector<4x32xf32>
    %27 = vector.multi_reduction <add>, %26, %cst_13 [1] : vector<4x16x32xf32> to vector<4x32xf32>
    %cst_14 = arith.constant 1.600000e+01 : f32
    %28 = vector.broadcast %cst_14 : f32 to vector<4x32xf32>
    %29 = arith.divf %27, %28 : vector<4x32xf32>
    %c0_15 = arith.constant 0 : index
    %c0_16 = arith.constant 0 : index
    %30 = vector.load %arg4[%c0_15, %c0_16] : memref<32x32xf32, #tpu.memory_space<vmem>>, vector<32x32xf32>
    %cst_17 = arith.constant dense<0.000000e+00> : vector<4x32xf32>
    %31 = tpu.matmul %29, %30, %cst_17 {dimension_numbers = #tpu.dot_dimension_numbers<[1], [0], [0], [1], [0, 0, 1, 1], [], []>} : vector<4x32xf32>, vector<32x32xf32>, vector<4x32xf32> -> vector<4x32xf32>
    %32 = vector.shape_cast %25 : vector<64x32xf32> to vector<4x16x32xf32>
    %cst_18 = arith.constant dense<0.000000e+00> : vector<4x32xf32>
    %33 = vector.multi_reduction <add>, %32, %cst_18 [1] : vector<4x16x32xf32> to vector<4x32xf32>
    %cst_19 = arith.constant 1.600000e+01 : f32
    %34 = vector.broadcast %cst_19 : f32 to vector<4x32xf32>
    %35 = arith.divf %33, %34 : vector<4x32xf32>
    %36 = vector.shape_cast %31 : vector<4x32xf32> to vector<4x1x32xf32>
    %37 = vector.shape_cast %35 : vector<4x32xf32> to vector<1x4x32xf32>
    %38 = vector.broadcast %36 : vector<4x1x32xf32> to vector<4x4x32xf32>
    %39 = vector.broadcast %37 : vector<1x4x32xf32> to vector<4x4x32xf32>
    %40 = arith.mulf %38, %39 : vector<4x4x32xf32>
    %41 = vector.shape_cast %40 : vector<4x4x32xf32> to vector<16x32xf32>
    %c0_20 = arith.constant 0 : index
    %c0_21 = arith.constant 0 : index
    %42 = vector.load %arg8[%c0_20, %c0_21] : memref<32x4xf32, #tpu.memory_space<vmem>>, vector<32x4xf32>
    %cst_22 = arith.constant dense<0.000000e+00> : vector<16x4xf32>
    %43 = tpu.matmul %41, %42, %cst_22 {dimension_numbers = #tpu.dot_dimension_numbers<[1], [0], [0], [1], [0, 0, 1, 1], [], []>} : vector<16x32xf32>, vector<32x4xf32>, vector<16x4xf32> -> vector<16x4xf32>
    %cst_23 = arith.constant 0.353553385 : f32
    %44 = vector.broadcast %cst_23 : f32 to vector<16x4xf32>
    %45 = arith.mulf %43, %44 : vector<16x4xf32>
    %46 = vector.shape_cast %45 : vector<16x4xf32> to vector<4x4x4xf32>
    %cst_24 = arith.constant dense<0xFF800000> : vector<4x4xf32>
    %47 = vector.multi_reduction <maximumf>, %46, %cst_24 [1] : vector<4x4x4xf32> to vector<4x4xf32>
    %48 = vector.shape_cast %47 : vector<4x4xf32> to vector<4x1x4xf32>
    %49 = vector.broadcast %48 : vector<4x1x4xf32> to vector<4x4x4xf32>
    %50 = arith.subf %46, %49 : vector<4x4x4xf32>
    %51 = math.exp %50 : vector<4x4x4xf32>
    %cst_25 = arith.constant dense<0.000000e+00> : vector<4x4xf32>
    %52 = vector.multi_reduction <add>, %51, %cst_25 [1] : vector<4x4x4xf32> to vector<4x4xf32>
    %53 = vector.shape_cast %52 : vector<4x4xf32> to vector<4x1x4xf32>
    %54 = tpu.reciprocal %53 : vector<4x1x4xf32> -> vector<4x1x4xf32>
    %55 = vector.broadcast %54 : vector<4x1x4xf32> to vector<4x4x4xf32>
    %56 = arith.mulf %51, %55 : vector<4x4x4xf32>
    %57 = vector.shape_cast %56 : vector<4x4x4xf32> to vector<16x4xf32>
    %c0_26 = arith.constant 0 : index
    %c0_27 = arith.constant 0 : index
    %58 = vector.load %arg9[%c0_26, %c0_27] : memref<4x32xf32, #tpu.memory_space<vmem>>, vector<4x32xf32>
    %cst_28 = arith.constant dense<0.000000e+00> : vector<16x32xf32>
    %59 = tpu.matmul %57, %58, %cst_28 {dimension_numbers = #tpu.dot_dimension_numbers<[1], [0], [0], [1], [0, 0, 1, 1], [], []>} : vector<16x4xf32>, vector<4x32xf32>, vector<16x32xf32> -> vector<16x32xf32>
    %60 = vector.shape_cast %59 : vector<16x32xf32> to vector<4x4x32xf32>
    %61 = vector.extract_strided_slice %60 {offsets = [0, 0, 0], sizes = [4, 1, 32], strides = [1, 1, 1]} : vector<4x4x32xf32> to vector<4x1x32xf32>
    %62 = vector.shape_cast %61 : vector<4x1x32xf32> to vector<4x32xf32>
    %63 = vector.shape_cast %62 : vector<4x32xf32> to vector<4x1x32xf32>
    %64 = vector.extract_strided_slice %32 {offsets = [0, 0, 0], sizes = [1, 16, 32], strides = [1, 1, 1]} : vector<4x16x32xf32> to vector<1x16x32xf32>
    %65 = vector.shape_cast %64 : vector<1x16x32xf32> to vector<16x32xf32>
    %66 = vector.shape_cast %65 : vector<16x32xf32> to vector<1x16x32xf32>
    %67 = vector.broadcast %63 : vector<4x1x32xf32> to vector<4x16x32xf32>
    %68 = vector.broadcast %66 : vector<1x16x32xf32> to vector<4x16x32xf32>
    %69 = arith.mulf %67, %68 : vector<4x16x32xf32>
    %70 = vector.extract_strided_slice %60 {offsets = [0, 1, 0], sizes = [4, 1, 32], strides = [1, 1, 1]} : vector<4x4x32xf32> to vector<4x1x32xf32>
    %71 = vector.shape_cast %70 : vector<4x1x32xf32> to vector<4x32xf32>
    %72 = vector.shape_cast %71 : vector<4x32xf32> to vector<4x1x32xf32>
    %73 = vector.extract_strided_slice %32 {offsets = [1, 0, 0], sizes = [1, 16, 32], strides = [1, 1, 1]} : vector<4x16x32xf32> to vector<1x16x32xf32>
    %74 = vector.shape_cast %73 : vector<1x16x32xf32> to vector<16x32xf32>
    %75 = vector.shape_cast %74 : vector<16x32xf32> to vector<1x16x32xf32>
    %76 = vector.broadcast %72 : vector<4x1x32xf32> to vector<4x16x32xf32>
    %77 = vector.broadcast %75 : vector<1x16x32xf32> to vector<4x16x32xf32>
    %78 = arith.mulf %76, %77 : vector<4x16x32xf32>
    %79 = arith.addf %69, %78 : vector<4x16x32xf32>
    %80 = vector.extract_strided_slice %60 {offsets = [0, 2, 0], sizes = [4, 1, 32], strides = [1, 1, 1]} : vector<4x4x32xf32> to vector<4x1x32xf32>
    %81 = vector.shape_cast %80 : vector<4x1x32xf32> to vector<4x32xf32>
    %82 = vector.shape_cast %81 : vector<4x32xf32> to vector<4x1x32xf32>
    %83 = vector.extract_strided_slice %32 {offsets = [2, 0, 0], sizes = [1, 16, 32], strides = [1, 1, 1]} : vector<4x16x32xf32> to vector<1x16x32xf32>
    %84 = vector.shape_cast %83 : vector<1x16x32xf32> to vector<16x32xf32>
    %85 = vector.shape_cast %84 : vector<16x32xf32> to vector<1x16x32xf32>
    %86 = vector.broadcast %82 : vector<4x1x32xf32> to vector<4x16x32xf32>
    %87 = vector.broadcast %85 : vector<1x16x32xf32> to vector<4x16x32xf32>
    %88 = arith.mulf %86, %87 : vector<4x16x32xf32>
    %89 = arith.addf %79, %88 : vector<4x16x32xf32>
    %90 = vector.extract_strided_slice %60 {offsets = [0, 3, 0], sizes = [4, 1, 32], strides = [1, 1, 1]} : vector<4x4x32xf32> to vector<4x1x32xf32>
    %91 = vector.shape_cast %90 : vector<4x1x32xf32> to vector<4x32xf32>
    %92 = vector.shape_cast %91 : vector<4x32xf32> to vector<4x1x32xf32>
    %93 = vector.extract_strided_slice %32 {offsets = [3, 0, 0], sizes = [1, 16, 32], strides = [1, 1, 1]} : vector<4x16x32xf32> to vector<1x16x32xf32>
    %94 = vector.shape_cast %93 : vector<1x16x32xf32> to vector<16x32xf32>
    %95 = vector.shape_cast %94 : vector<16x32xf32> to vector<1x16x32xf32>
    %96 = vector.broadcast %92 : vector<4x1x32xf32> to vector<4x16x32xf32>
    %97 = vector.broadcast %95 : vector<1x16x32xf32> to vector<4x16x32xf32>
    %98 = arith.mulf %96, %97 : vector<4x16x32xf32>
    %99 = arith.addf %89, %98 : vector<4x16x32xf32>
    %100 = vector.shape_cast %99 : vector<4x16x32xf32> to vector<64x32xf32>
    %c0_29 = arith.constant 0 : index
    %c0_30 = arith.constant 0 : index
    %101 = vector.load %arg6[%c0_29, %c0_30] : memref<32x32xf32, #tpu.memory_space<vmem>>, vector<32x32xf32>
    %cst_31 = arith.constant dense<0.000000e+00> : vector<64x32xf32>
    %102 = tpu.matmul %100, %101, %cst_31 {dimension_numbers = #tpu.dot_dimension_numbers<[1], [0], [0], [1], [0, 0, 1, 1], [], []>} : vector<64x32xf32>, vector<32x32xf32>, vector<64x32xf32> -> vector<64x32xf32>
    %c0_32 = arith.constant 0 : index
    %c0_33 = arith.constant 0 : index
    %103 = vector.load %arg7[%c0_32, %c0_33] : memref<1x32xf32, #tpu.memory_space<vmem>>, vector<1x32xf32>
    %104 = vector.broadcast %103 : vector<1x32xf32> to vector<64x32xf32>
    %105 = arith.addf %102, %104 : vector<64x32xf32>
    %106 = arith.addf %1, %105 : vector<64x32xf32>
    %c0_34 = arith.constant 0 : index
    %c0_35 = arith.constant 0 : index
    %c0_36 = arith.constant 0 : index
    %107 = vector.load %arg16[%c0_34, %c0_35, %c0_36] : memref<1x64x32xf32, #tpu.memory_space<vmem>>, vector<1x64x32xf32>
    %108 = vector.shape_cast %107 : vector<1x64x32xf32> to vector<64x32xf32>
    %109 = vector.shape_cast %106 : vector<64x32xf32> to vector<1x64x32xf32>
    tpu.vector_store %arg16[%c0_34, %c0_35, %c0_36], %109 {strides = array<i32>} : memref<1x64x32xf32, #tpu.memory_space<vmem>>, vector<1x64x32xf32>,
    %c0_37 = arith.constant 0 : index
    %c0_38 = arith.constant 0 : index
    %110 = vector.load %arg10[%c0_37, %c0_38] : memref<1x32xf32, #tpu.memory_space<vmem>>, vector<1x32xf32>
    %c0_39 = arith.constant 0 : index
    %c0_40 = arith.constant 0 : index
    %111 = vector.load %arg11[%c0_39, %c0_40] : memref<1x32xf32, #tpu.memory_space<vmem>>, vector<1x32xf32>
    %c0_41 = arith.constant 0 : index
    %c0_42 = arith.constant 0 : index
    %112 = vector.load %arg13[%c0_41, %c0_42] : memref<1x128xf32, #tpu.memory_space<vmem>>, vector<1x128xf32>
    %c0_43 = arith.constant 0 : index
    %c0_44 = arith.constant 0 : index
    %113 = vector.load %arg15[%c0_43, %c0_44] : memref<1x32xf32, #tpu.memory_space<vmem>>, vector<1x32xf32>
    %c0_45 = arith.constant 0 : index
    %c0_46 = arith.constant 0 : index
    %c0_47 = arith.constant 0 : index
    %114 = vector.load %arg16[%c0_45, %c0_46, %c0_47] : memref<1x64x32xf32, #tpu.memory_space<vmem>>, vector<1x64x32xf32>
    %115 = vector.shape_cast %114 : vector<1x64x32xf32> to vector<64x32xf32>
    %cst_48 = arith.constant dense<0.000000e+00> : vector<64xf32>
    %116 = vector.multi_reduction <add>, %115, %cst_48 [1] : vector<64x32xf32> to vector<64xf32>
    %117 = vector.shape_cast %116 : vector<64xf32> to vector<64x1xf32>
    %cst_49 = arith.constant 3.200000e+01 : f32
    %118 = vector.broadcast %cst_49 : f32 to vector<64x1xf32>
    %119 = arith.divf %117, %118 : vector<64x1xf32>
    %120 = vector.broadcast %119 : vector<64x1xf32> to vector<64x32xf32>
    %121 = arith.subf %115, %120 : vector<64x32xf32>
    %122 = arith.mulf %121, %121 : vector<64x32xf32>
    %cst_50 = arith.constant dense<0.000000e+00> : vector<64xf32>
    %123 = vector.multi_reduction <add>, %122, %cst_50 [1] : vector<64x32xf32> to vector<64xf32>
    %124 = vector.shape_cast %123 : vector<64xf32> to vector<64x1xf32>
    %cst_51 = arith.constant 3.200000e+01 : f32
    %125 = vector.broadcast %cst_51 : f32 to vector<64x1xf32>
    %126 = arith.divf %124, %125 : vector<64x1xf32>
    %cst_52 = arith.constant 9.99999974E-6 : f32
    %127 = vector.broadcast %cst_52 : f32 to vector<64x1xf32>
    %128 = arith.addf %126, %127 : vector<64x1xf32>
    %129 = math.rsqrt %128 : vector<64x1xf32>
    %130 = vector.broadcast %129 : vector<64x1xf32> to vector<64x32xf32>
    %131 = arith.mulf %121, %130 : vector<64x32xf32>
    %132 = vector.broadcast %110 : vector<1x32xf32> to vector<64x32xf32>
    %133 = arith.mulf %131, %132 : vector<64x32xf32>
    %134 = vector.broadcast %111 : vector<1x32xf32> to vector<64x32xf32>
    %135 = arith.addf %133, %134 : vector<64x32xf32>
    %c0_53 = arith.constant 0 : index
    %c0_54 = arith.constant 0 : index
    %136 = vector.load %arg12[%c0_53, %c0_54] : memref<32x128xf32, #tpu.memory_space<vmem>>, vector<32x128xf32>
    %cst_55 = arith.constant dense<0.000000e+00> : vector<64x128xf32>
    %137 = tpu.matmul %135, %136, %cst_55 {dimension_numbers = #tpu.dot_dimension_numbers<[1], [0], [0], [1], [0, 0, 1, 1], [], []>} : vector<64x32xf32>, vector<32x128xf32>, vector<64x128xf32> -> vector<64x128xf32>
    %138 = vector.broadcast %112 : vector<1x128xf32> to vector<64x128xf32>
    %139 = arith.addf %137, %138 : vector<64x128xf32>
    %cst_56 = arith.constant 5.000000e-01 : f32
    %140 = vector.broadcast %cst_56 : f32 to vector<64x128xf32>
    %141 = arith.mulf %140, %139 : vector<64x128xf32>
    %cst_57 = arith.constant 0.707106769 : f32
    %142 = vector.broadcast %cst_57 : f32 to vector<64x128xf32>
    %143 = arith.mulf %139, %142 : vector<64x128xf32>
    %cst_58 = arith.constant 0.000000e+00 : f32
    %144 = vector.broadcast %cst_58 : f32 to vector<64x128xf32>
    %145 = arith.cmpf oge, %143, %144 : vector<64x128xf32>
    %cst_59 = arith.constant 1.000000e+00 : f32
    %cst_60 = arith.constant -1.000000e+00 : f32
    %146 = vector.broadcast %cst_59 : f32 to vector<64x128xf32>
    %147 = vector.broadcast %cst_60 : f32 to vector<64x128xf32>
    %148 = arith.select %145, %146, %147 : vector<64x128xi1>, vector<64x128xf32>
    %149 = math.absf %143 : vector<64x128xf32>
    %cst_61 = arith.constant 0.327591091 : f32
    %150 = vector.broadcast %cst_61 : f32 to vector<64x128xf32>
    %151 = arith.mulf %150, %149 : vector<64x128xf32>
    %cst_62 = arith.constant 1.000000e+00 : f32
    %152 = vector.broadcast %cst_62 : f32 to vector<64x128xf32>
    %153 = arith.addf %152, %151 : vector<64x128xf32>
    %cst_63 = arith.constant 1.000000e+00 : f32
    %154 = vector.broadcast %cst_63 : f32 to vector<64x128xf32>
    %155 = arith.divf %154, %153 : vector<64x128xf32>
    %cst_64 = arith.constant 1.06140542 : f32
    %156 = vector.broadcast %cst_64 : f32 to vector<64x128xf32>
    %157 = arith.mulf %156, %155 : vector<64x128xf32>
    %cst_65 = arith.constant -1.45315206 : f32
    %158 = vector.broadcast %cst_65 : f32 to vector<64x128xf32>
    %159 = arith.addf %157, %158 : vector<64x128xf32>
    %160 = arith.mulf %159, %155 : vector<64x128xf32>
    %cst_66 = arith.constant 1.42141378 : f32
    %161 = vector.broadcast %cst_66 : f32 to vector<64x128xf32>
    %162 = arith.addf %160, %161 : vector<64x128xf32>
    %163 = arith.mulf %162, %155 : vector<64x128xf32>
    %cst_67 = arith.constant -0.284496725 : f32
    %164 = vector.broadcast %cst_67 : f32 to vector<64x128xf32>
    %165 = arith.addf %163, %164 : vector<64x128xf32>
    %166 = arith.mulf %165, %155 : vector<64x128xf32>
    %cst_68 = arith.constant 0.254829586 : f32
    %167 = vector.broadcast %cst_68 : f32 to vector<64x128xf32>
    %168 = arith.addf %166, %167 : vector<64x128xf32>
    %169 = arith.mulf %168, %155 : vector<64x128xf32>
    %cst_69 = arith.constant 0.000000e+00 : f32
    %170 = vector.broadcast %cst_69 : f32 to vector<64x128xf32>
    %171 = arith.subf %170, %149 : vector<64x128xf32>
    %172 = arith.mulf %171, %149 : vector<64x128xf32>
    %173 = math.exp %172 : vector<64x128xf32>
    %174 = arith.mulf %169, %173 : vector<64x128xf32>
    %cst_70 = arith.constant 1.000000e+00 : f32
    %175 = vector.broadcast %cst_70 : f32 to vector<64x128xf32>
    %176 = arith.subf %175, %174 : vector<64x128xf32>
    %177 = arith.mulf %148, %176 : vector<64x128xf32>
    %cst_71 = arith.constant 1.000000e+00 : f32
    %178 = vector.broadcast %cst_71 : f32 to vector<64x128xf32>
    %179 = arith.addf %178, %177 : vector<64x128xf32>
    %180 = arith.mulf %141, %179 : vector<64x128xf32>
    %c0_72 = arith.constant 0 : index
    %c0_73 = arith.constant 0 : index
    %181 = vector.load %arg14[%c0_72, %c0_73] : memref<128x32xf32, #tpu.memory_space<vmem>>, vector<128x32xf32>
    %cst_74 = arith.constant dense<0.000000e+00> : vector<64x32xf32>
    %182 = tpu.matmul %180, %181, %cst_74 {dimension_numbers = #tpu.dot_dimension_numbers<[1], [0], [0], [1], [0, 0, 1, 1], [], []>} : vector<64x128xf32>, vector<128x32xf32>, vector<64x32xf32> -> vector<64x32xf32>
    %183 = vector.broadcast %113 : vector<1x32xf32> to vector<64x32xf32>
    %184 = arith.addf %182, %183 : vector<64x32xf32>
    %185 = arith.addf %115, %184 : vector<64x32xf32>
    %c0_75 = arith.constant 0 : index
    %c0_76 = arith.constant 0 : index
    %c0_77 = arith.constant 0 : index
    %186 = vector.load %arg16[%c0_75, %c0_76, %c0_77] : memref<1x64x32xf32, #tpu.memory_space<vmem>>, vector<1x64x32xf32>
    %187 = vector.shape_cast %186 : vector<1x64x32xf32> to vector<64x32xf32>
    %188 = vector.shape_cast %185 : vector<64x32xf32> to vector<1x64x32xf32>
    tpu.vector_store %arg16[%c0_75, %c0_76, %c0_77], %188 {strides = array<i32>} : memref<1x64x32xf32, #tpu.memory_space<vmem>>, vector<1x64x32xf32>,
    return
  }
  func.func @transform_0(%arg0: i32) -> (i32, i32, i32) {
    %c0_i32 = arith.constant 0 : i32
    %c0_i32_0 = arith.constant 0 : i32
    %c0_i32_1 = arith.constant 0 : i32
    return %arg0, %c0_i32, %c0_i32_0 : i32, i32, i32
  }
  func.func @transform_1(%arg0: i32) -> (i32, i32) {
    %c0_i32 = arith.constant 0 : i32
    %c0_i32_0 = arith.constant 0 : i32
    %c0_i32_1 = arith.constant 0 : i32
    return %c0_i32, %c0_i32_0 : i32, i32
  }
  func.func @transform_2(%arg0: i32) -> (i32, i32) {
    %c0_i32 = arith.constant 0 : i32
    %c0_i32_0 = arith.constant 0 : i32
    %c0_i32_1 = arith.constant 0 : i32
    return %c0_i32, %c0_i32_0 : i32, i32
  }
  func.func @transform_3(%arg0: i32) -> (i32, i32) {
    %c0_i32 = arith.constant 0 : i32
    %c0_i32_0 = arith.constant 0 : i32
    %c0_i32_1 = arith.constant 0 : i32
    return %c0_i32, %c0_i32_0 : i32, i32
  }
  func.func @transform_4(%arg0: i32) -> (i32, i32) {
    %c0_i32 = arith.constant 0 : i32
    %c0_i32_0 = arith.constant 0 : i32
    %c0_i32_1 = arith.constant 0 : i32
    return %c0_i32, %c0_i32_0 : i32, i32
  }
  func.func @transform_5(%arg0: i32) -> (i32, i32) {
    %c0_i32 = arith.constant 0 : i32
    %c0_i32_0 = arith.constant 0 : i32
    %c0_i32_1 = arith.constant 0 : i32
    return %c0_i32, %c0_i32_0 : i32, i32
  }
  func.func @transform_6(%arg0: i32) -> (i32, i32) {
    %c0_i32 = arith.constant 0 : i32
    %c0_i32_0 = arith.constant 0 : i32
    %c0_i32_1 = arith.constant 0 : i32
    return %c0_i32, %c0_i32_0 : i32, i32
  }
  func.func @transform_7(%arg0: i32) -> (i32, i32) {
    %c0_i32 = arith.constant 0 : i32
    %c0_i32_0 = arith.constant 0 : i32
    %c0_i32_1 = arith.constant 0 : i32
    return %c0_i32, %c0_i32_0 : i32, i32
  }
  func.func @transform_8(%arg0: i32) -> (i32, i32) {
    %c0_i32 = arith.constant 0 : i32
    %c0_i32_0 = arith.constant 0 : i32
    %c0_i32_1 = arith.constant 0 : i32
    return %c0_i32, %c0_i32_0 : i32, i32
  }
  func.func @transform_9(%arg0: i32) -> (i32, i32) {
    %c0_i32 = arith.constant 0 : i32
    %c0_i32_0 = arith.constant 0 : i32
    %c0_i32_1 = arith.constant 0 : i32
    return %c0_i32, %c0_i32_0 : i32, i32
  }
  func.func @transform_10(%arg0: i32) -> (i32, i32) {
    %c0_i32 = arith.constant 0 : i32
    %c0_i32_0 = arith.constant 0 : i32
    %c0_i32_1 = arith.constant 0 : i32
    return %c0_i32, %c0_i32_0 : i32, i32
  }
  func.func @transform_11(%arg0: i32) -> (i32, i32) {
    %c0_i32 = arith.constant 0 : i32
    %c0_i32_0 = arith.constant 0 : i32
    %c0_i32_1 = arith.constant 0 : i32
    return %c0_i32, %c0_i32_0 : i32, i32
  }
  func.func @transform_12(%arg0: i32) -> (i32, i32) {
    %c0_i32 = arith.constant 0 : i32
    %c0_i32_0 = arith.constant 0 : i32
    %c0_i32_1 = arith.constant 0 : i32
    return %c0_i32, %c0_i32_0 : i32, i32
  }
  func.func @transform_13(%arg0: i32) -> (i32, i32) {
    %c0_i32 = arith.constant 0 : i32
    %c0_i32_0 = arith.constant 0 : i32
    %c0_i32_1 = arith.constant 0 : i32
    return %c0_i32, %c0_i32_0 : i32, i32
  }
  func.func @transform_14(%arg0: i32) -> (i32, i32) {
    %c0_i32 = arith.constant 0 : i32
    %c0_i32_0 = arith.constant 0 : i32
    %c0_i32_1 = arith.constant 0 : i32
    return %c0_i32, %c0_i32_0 : i32, i32
  }
  func.func @transform_15(%arg0: i32) -> (i32, i32, i32) {
    %c0_i32 = arith.constant 0 : i32
    %c0_i32_0 = arith.constant 0 : i32
    %c0_i32_1 = arith.constant 0 : i32
    return %arg0, %c0_i32, %c0_i32_0 : i32, i32, i32
  }
}

</mosaic_0001>

<llo_original>
// kernel: tpu_custom_call.1
$region0: #{tpu_custom_call.1}
  #allocation0 [shape = 'u32[]', space=smem, size = 0x4, offset = 0x4, fixed_abs, tag = 'smem constant byte address 0x4 - core index']
  #allocation1 [shape = 'u32[144,128]{1,0:T(1,128)}', space=vmem, size = 0x12000, scoped, tag = 'internal scratch']
  %s0 = inlined_call_operand.vmem [shape: f32[2,64,32], index: 0, kind: input, shape index: {}]
  %s1 = inlined_call_operand.vmem [shape: f32[1,32], index: 1, kind: input, shape index: {}]
  %s2 = inlined_call_operand.vmem [shape: f32[1,32], index: 2, kind: input, shape index: {}]
  %s3 = inlined_call_operand.vmem [shape: f32[32,32], index: 3, kind: input, shape index: {}]
  %s4 = inlined_call_operand.vmem [shape: f32[32,32], index: 4, kind: input, shape index: {}]
  %s5 = inlined_call_operand.vmem [shape: f32[32,32], index: 5, kind: input, shape index: {}]
  %s6 = inlined_call_operand.vmem [shape: f32[1,32], index: 6, kind: input, shape index: {}]
  %s7 = inlined_call_operand.vmem [shape: f32[32,4], index: 7, kind: input, shape index: {}]
  %s8 = inlined_call_operand.vmem [shape: f32[4,32], index: 8, kind: input, shape index: {}]
  %s9 = inlined_call_operand.vmem [shape: f32[1,32], index: 9, kind: input, shape index: {}]
  %s10 = inlined_call_operand.vmem [shape: f32[1,32], index: 10, kind: input, shape index: {}]
  %s11 = inlined_call_operand.vmem [shape: f32[32,128], index: 11, kind: input, shape index: {}]
  %s12 = inlined_call_operand.vmem [shape: f32[1,128], index: 12, kind: input, shape index: {}]
  %s13 = inlined_call_operand.vmem [shape: f32[128,32], index: 13, kind: input, shape index: {}]
  %s14 = inlined_call_operand.vmem [shape: f32[1,32], index: 14, kind: input, shape index: {}]
  %s15 = inlined_call_operand.vmem [shape: f32[2,64,32], index: 15, kind: output, shape index: {}]
  %s16 = sld [smem:[#allocation0]]
  $region93: #{tpu_custom_call.1} parent=0
    _
  %s18 = ssub.s32 1, %s16
  %s19 = scalar_select 0, %s18, %s16
  loop: start=0, step=1, limit=4
  $region2: #{tpu_custom_call.1} parent=0 // loop_pre_header
    _
  $region3: #{tpu_custom_call.1} parent=0 // loop_header
    %s21 = sphi 0, %s25
    %p22 = scmp.ge.s32.totalorder %s21, 4
    %s31 = sphi 0, %s33
    %s34 = sphi 0, %s31
    %s35 = sphi 0, %s34
    %s51 = sphi 0, %s35
    %s55 = sphi 0, %s55
    %s57 = sphi 0, %s55
    %s58 = sphi 0, %s57
    %s72 = sphi 0, %s58
    %s76 = sphi 0, %s76
    %s78 = sphi 0, %s76
    %s79 = sphi 0, %s78
    %s93 = sphi 0, %s79
    %s97 = sphi 0, %s97
    %s99 = sphi 0, %s97
    %s100 = sphi 0, %s99
    %s114 = sphi 0, %s100
    %s118 = sphi 0, %s118
    %s120 = sphi 0, %s118
    %s121 = sphi 0, %s120
    %s135 = sphi 0, %s121
    %s139 = sphi 0, %s139
    %s141 = sphi 0, %s139
    %s142 = sphi 0, %s141
    %s156 = sphi 0, %s142
    %s160 = sphi 0, %s160
    %s162 = sphi 0, %s160
    %s163 = sphi 0, %s162
    %s177 = sphi 0, %s163
    %s181 = sphi 0, %s181
    %s183 = sphi 0, %s181
    %s184 = sphi 0, %s183
    %s198 = sphi 0, %s184
    %s202 = sphi 0, %s202
    %s204 = sphi 0, %s202
    %s205 = sphi 0, %s204
    %s219 = sphi 0, %s205
    %s223 = sphi 0, %s223
    %s225 = sphi 0, %s223
    %s226 = sphi 0, %s225
    %s240 = sphi 0, %s226
    %s244 = sphi 0, %s244
    %s246 = sphi 0, %s244
    %s247 = sphi 0, %s246
    %s261 = sphi 0, %s247
    %s265 = sphi 0, %s265
    %s267 = sphi 0, %s265
    %s268 = sphi 0, %s267
    %s282 = sphi 0, %s268
    %s286 = sphi 0, %s286
    %s288 = sphi 0, %s286
    %s289 = sphi 0, %s288
    %s303 = sphi 0, %s289
    %s307 = sphi 0, %s307
    %s309 = sphi 0, %s307
    %s310 = sphi 0, %s309
    %s324 = sphi 0, %s310
    %s328 = sphi 0, %s328
    %s330 = sphi 0, %s328
    %s331 = sphi 0, %s330
    %s345 = sphi 0, %s331
    %s351 = sphi 0, %s353
    %s354 = sphi 0, %s351
    %s355 = sphi 0, %s354
    %s371 = sphi 0, %s355
  $region4: #{tpu_custom_call.1} parent=0 // loop_header_branch
    %24 = sbr.rel (%p22) target = $region8
  $region5: #{tpu_custom_call.1} parent=0 // loop_body
    %s26 = ssub.s32 %s21, 1
    %s27 = ssub.s32 %s21, 2
    %s28 = sadd.s32 %s21, 1
    %s29 = ssub.s32 %s21, %s28
    %p30 = scmp.eq.s32.totalorder %s29, 0
    %s32 = sadd.s32 %s31, 1
    %s33 = scalar_select %p30, %s31, %s32
    %p36 = pneg %p30
    %p37 = scmp.eq.s32.totalorder %s21, 1
    %p38 = por %p36, %p37
    %p39 = scmp.ne.s32.totalorder %s31, %s34
    %p40 = scmp.eq.s32.totalorder %s21, 0
    %p41 = por %p39, %p40
    %p42 = scmp.ne.s32.totalorder %s31, %s34
    %p43 = scmp.eq.s32.totalorder %s26, 1
    %p44 = por %p42, %p43
    %p45 = scmp.ne.s32.totalorder %s34, %s35
    %p46 = scmp.eq.s32.totalorder %s26, 0
    %p47 = por %p45, %p46
    %p48 = scmp.ne.s32.totalorder %s34, %s35
    %p49 = scmp.eq.s32.totalorder %s27, 1
    %p50 = por %p48, %p49
    %p52 = scmp.ne.s32.totalorder %s35, %s51
    %p53 = scmp.eq.s32.totalorder %s27, 0
    %p54 = por %p52, %p53
    %s56 = sadd.s32 %s55, 1
    %p59 = scmp.eq.s32.totalorder %s21, 1
    %p60 = scmp.ne.s32.totalorder %s55, %s57
    %p61 = scmp.eq.s32.totalorder %s21, 0
    %p62 = por %p60, %p61
    %p63 = scmp.ne.s32.totalorder %s55, %s57
    %p64 = scmp.eq.s32.totalorder %s26, 1
    %p65 = por %p63, %p64
    %p66 = scmp.ne.s32.totalorder %s57, %s58
    %p67 = scmp.eq.s32.totalorder %s26, 0
    %p68 = por %p66, %p67
    %p69 = scmp.ne.s32.totalorder %s57, %s58
    %p70 = scmp.eq.s32.totalorder %s27, 1
    %p71 = por %p69, %p70
    %p73 = scmp.ne.s32.totalorder %s58, %s72
    %p74 = scmp.eq.s32.totalorder %s27, 0
    %p75 = por %p73, %p74
    %s77 = sadd.s32 %s76, 1
    %p80 = scmp.eq.s32.totalorder %s21, 1
    %p81 = scmp.ne.s32.totalorder %s76, %s78
    %p82 = scmp.eq.s32.totalorder %s21, 0
    %p83 = por %p81, %p82
    %p84 = scmp.ne.s32.totalorder %s76, %s78
    %p85 = scmp.eq.s32.totalorder %s26, 1
    %p86 = por %p84, %p85
    %p87 = scmp.ne.s32.totalorder %s78, %s79
    %p88 = scmp.eq.s32.totalorder %s26, 0
    %p89 = por %p87, %p88
    %p90 = scmp.ne.s32.totalorder %s78, %s79
    %p91 = scmp.eq.s32.totalorder %s27, 1
    %p92 = por %p90, %p91
    %p94 = scmp.ne.s32.totalorder %s79, %s93
    %p95 = scmp.eq.s32.totalorder %s27, 0
    %p96 = por %p94, %p95
    %s98 = sadd.s32 %s97, 1
    %p101 = scmp.eq.s32.totalorder %s21, 1
    %p102 = scmp.ne.s32.totalorder %s97, %s99
    %p103 = scmp.eq.s32.totalorder %s21, 0
    %p104 = por %p102, %p103
    %p105 = scmp.ne.s32.totalorder %s97, %s99
    %p106 = scmp.eq.s32.totalorder %s26, 1
    %p107 = por %p105, %p106
    %p108 = scmp.ne.s32.totalorder %s99, %s100
    %p109 = scmp.eq.s32.totalorder %s26, 0
    %p110 = por %p108, %p109
    %p111 = scmp.ne.s32.totalorder %s99, %s100
    %p112 = scmp.eq.s32.totalorder %s27, 1
    %p113 = por %p111, %p112
    %p115 = scmp.ne.s32.totalorder %s100, %s114
    %p116 = scmp.eq.s32.totalorder %s27, 0
    %p117 = por %p115, %p116
    %s119 = sadd.s32 %s118, 1
    %p122 = scmp.eq.s32.totalorder %s21, 1
    %p123 = scmp.ne.s32.totalorder %s118, %s120
    %p124 = scmp.eq.s32.totalorder %s21, 0
    %p125 = por %p123, %p124
    %p126 = scmp.ne.s32.totalorder %s118, %s120
    %p127 = scmp.eq.s32.totalorder %s26, 1
    %p128 = por %p126, %p127
    %p129 = scmp.ne.s32.totalorder %s120, %s121
    %p130 = scmp.eq.s32.totalorder %s26, 0
    %p131 = por %p129, %p130
    %p132 = scmp.ne.s32.totalorder %s120, %s121
    %p133 = scmp.eq.s32.totalorder %s27, 1
    %p134 = por %p132, %p133
    %p136 = scmp.ne.s32.totalorder %s121, %s135
    %p137 = scmp.eq.s32.totalorder %s27, 0
    %p138 = por %p136, %p137
    %s140 = sadd.s32 %s139, 1
    %p143 = scmp.eq.s32.totalorder %s21, 1
    %p144 = scmp.ne.s32.totalorder %s139, %s141
    %p145 = scmp.eq.s32.totalorder %s21, 0
    %p146 = por %p144, %p145
    %p147 = scmp.ne.s32.totalorder %s139, %s141
    %p148 = scmp.eq.s32.totalorder %s26, 1
    %p149 = por %p147, %p148
    %p150 = scmp.ne.s32.totalorder %s141, %s142
    %p151 = scmp.eq.s32.totalorder %s26, 0
    %p152 = por %p150, %p151
    %p153 = scmp.ne.s32.totalorder %s141, %s142
    %p154 = scmp.eq.s32.totalorder %s27, 1
    %p155 = por %p153, %p154
    %p157 = scmp.ne.s32.totalorder %s142, %s156
    %p158 = scmp.eq.s32.totalorder %s27, 0
    %p159 = por %p157, %p158
    %s161 = sadd.s32 %s160, 1
    %p164 = scmp.eq.s32.totalorder %s21, 1
    %p165 = scmp.ne.s32.totalorder %s160, %s162
    %p166 = scmp.eq.s32.totalorder %s21, 0
    %p167 = por %p165, %p166
    %p168 = scmp.ne.s32.totalorder %s160, %s162
    %p169 = scmp.eq.s32.totalorder %s26, 1
    %p170 = por %p168, %p169
    %p171 = scmp.ne.s32.totalorder %s162, %s163
    %p172 = scmp.eq.s32.totalorder %s26, 0
    %p173 = por %p171, %p172
    %p174 = scmp.ne.s32.totalorder %s162, %s163
    %p175 = scmp.eq.s32.totalorder %s27, 1
    %p176 = por %p174, %p175
    %p178 = scmp.ne.s32.totalorder %s163, %s177
    %p179 = scmp.eq.s32.totalorder %s27, 0
    %p180 = por %p178, %p179
    %s182 = sadd.s32 %s181, 1
    %p185 = scmp.eq.s32.totalorder %s21, 1
    %p186 = scmp.ne.s32.totalorder %s181, %s183
    %p187 = scmp.eq.s32.totalorder %s21, 0
    %p188 = por %p186, %p187
    %p189 = scmp.ne.s32.totalorder %s181, %s183
    %p190 = scmp.eq.s32.totalorder %s26, 1
    %p191 = por %p189, %p190
    %p192 = scmp.ne.s32.totalorder %s183, %s184
    %p193 = scmp.eq.s32.totalorder %s26, 0
    %p194 = por %p192, %p193
    %p195 = scmp.ne.s32.totalorder %s183, %s184
    %p196 = scmp.eq.s32.totalorder %s27, 1
    %p197 = por %p195, %p196
    %p199 = scmp.ne.s32.totalorder %s184, %s198
    %p200 = scmp.eq.s32.totalorder %s27, 0
    %p201 = por %p199, %p200
    %s203 = sadd.s32 %s202, 1
    %p206 = scmp.eq.s32.totalorder %s21, 1
    %p207 = scmp.ne.s32.totalorder %s202, %s204
    %p208 = scmp.eq.s32.totalorder %s21, 0
    %p209 = por %p207, %p208
    %p210 = scmp.ne.s32.totalorder %s202, %s204
    %p211 = scmp.eq.s32.totalorder %s26, 1
    %p212 = por %p210, %p211
    %p213 = scmp.ne.s32.totalorder %s204, %s205
    %p214 = scmp.eq.s32.totalorder %s26, 0
    %p215 = por %p213, %p214
    %p216 = scmp.ne.s32.totalorder %s204, %s205
    %p217 = scmp.eq.s32.totalorder %s27, 1
    %p218 = por %p216, %p217
    %p220 = scmp.ne.s32.totalorder %s205, %s219
    %p221 = scmp.eq.s32.totalorder %s27, 0
    %p222 = por %p220, %p221
    %s224 = sadd.s32 %s223, 1
    %p227 = scmp.eq.s32.totalorder %s21, 1
    %p228 = scmp.ne.s32.totalorder %s223, %s225
    %p229 = scmp.eq.s32.totalorder %s21, 0
    %p230 = por %p228, %p229
    %p231 = scmp.ne.s32.totalorder %s223, %s225
    %p232 = scmp.eq.s32.totalorder %s26, 1
    %p233 = por %p231, %p232
    %p234 = scmp.ne.s32.totalorder %s225, %s226
    %p235 = scmp.eq.s32.totalorder %s26, 0
    %p236 = por %p234, %p235
    %p237 = scmp.ne.s32.totalorder %s225, %s226
    %p238 = scmp.eq.s32.totalorder %s27, 1
    %p239 = por %p237, %p238
    %p241 = scmp.ne.s32.totalorder %s226, %s240
    %p242 = scmp.eq.s32.totalorder %s27, 0
    %p243 = por %p241, %p242
    %s245 = sadd.s32 %s244, 1
    %p248 = scmp.eq.s32.totalorder %s21, 1
    %p249 = scmp.ne.s32.totalorder %s244, %s246
    %p250 = scmp.eq.s32.totalorder %s21, 0
    %p251 = por %p249, %p250
    %p252 = scmp.ne.s32.totalorder %s244, %s246
    %p253 = scmp.eq.s32.totalorder %s26, 1
    %p254 = por %p252, %p253
    %p255 = scmp.ne.s32.totalorder %s246, %s247
    %p256 = scmp.eq.s32.totalorder %s26, 0
    %p257 = por %p255, %p256
    %p258 = scmp.ne.s32.totalorder %s246, %s247
    %p259 = scmp.eq.s32.totalorder %s27, 1
    %p260 = por %p258, %p259
    %p262 = scmp.ne.s32.totalorder %s247, %s261
    %p263 = scmp.eq.s32.totalorder %s27, 0
    %p264 = por %p262, %p263
    %s266 = sadd.s32 %s265, 1
    %p269 = scmp.eq.s32.totalorder %s21, 1
    %p270 = scmp.ne.s32.totalorder %s265, %s267
    %p271 = scmp.eq.s32.totalorder %s21, 0
    %p272 = por %p270, %p271
    %p273 = scmp.ne.s32.totalorder %s265, %s267
    %p274 = scmp.eq.s32.totalorder %s26, 1
    %p275 = por %p273, %p274
    %p276 = scmp.ne.s32.totalorder %s267, %s268
    %p277 = scmp.eq.s32.totalorder %s26, 0
    %p278 = por %p276, %p277
    %p279 = scmp.ne.s32.totalorder %s267, %s268
    %p280 = scmp.eq.s32.totalorder %s27, 1
    %p281 = por %p279, %p280
    %p283 = scmp.ne.s32.totalorder %s268, %s282
    %p284 = scmp.eq.s32.totalorder %s27, 0
    %p285 = por %p283, %p284
    %s287 = sadd.s32 %s286, 1
    %p290 = scmp.eq.s32.totalorder %s21, 1
    %p291 = scmp.ne.s32.totalorder %s286, %s288
    %p292 = scmp.eq.s32.totalorder %s21, 0
    %p293 = por %p291, %p292
    %p294 = scmp.ne.s32.totalorder %s286, %s288
    %p295 = scmp.eq.s32.totalorder %s26, 1
    %p296 = por %p294, %p295
    %p297 = scmp.ne.s32.totalorder %s288, %s289
    %p298 = scmp.eq.s32.totalorder %s26, 0
    %p299 = por %p297, %p298
    %p300 = scmp.ne.s32.totalorder %s288, %s289
    %p301 = scmp.eq.s32.totalorder %s27, 1
    %p302 = por %p300, %p301
    %p304 = scmp.ne.s32.totalorder %s289, %s303
    %p305 = scmp.eq.s32.totalorder %s27, 0
    %p306 = por %p304, %p305
    %s308 = sadd.s32 %s307, 1
    %p311 = scmp.eq.s32.totalorder %s21, 1
    %p312 = scmp.ne.s32.totalorder %s307, %s309
    %p313 = scmp.eq.s32.totalorder %s21, 0
    %p314 = por %p312, %p313
    %p315 = scmp.ne.s32.totalorder %s307, %s309
    %p316 = scmp.eq.s32.totalorder %s26, 1
    %p317 = por %p315, %p316
    %p318 = scmp.ne.s32.totalorder %s309, %s310
    %p319 = scmp.eq.s32.totalorder %s26, 0
    %p320 = por %p318, %p319
    %p321 = scmp.ne.s32.totalorder %s309, %s310
    %p322 = scmp.eq.s32.totalorder %s27, 1
    %p323 = por %p321, %p322
    %p325 = scmp.ne.s32.totalorder %s310, %s324
    %p326 = scmp.eq.s32.totalorder %s27, 0
    %p327 = por %p325, %p326
    %s329 = sadd.s32 %s328, 1
    %p332 = scmp.eq.s32.totalorder %s21, 1
    %p333 = scmp.ne.s32.totalorder %s328, %s330
    %p334 = scmp.eq.s32.totalorder %s21, 0
    %p335 = por %p333, %p334
    %p336 = scmp.ne.s32.totalorder %s328, %s330
    %p337 = scmp.eq.s32.totalorder %s26, 1
    %p338 = por %p336, %p337
    %p339 = scmp.ne.s32.totalorder %s330, %s331
    %p340 = scmp.eq.s32.totalorder %s26, 0
    %p341 = por %p339, %p340
    %p342 = scmp.ne.s32.totalorder %s330, %s331
    %p343 = scmp.eq.s32.totalorder %s27, 1
    %p344 = por %p342, %p343
    %p346 = scmp.ne.s32.totalorder %s331, %s345
    %p347 = scmp.eq.s32.totalorder %s27, 0
    %p348 = por %p346, %p347
    %s349 = ssub.s32 %s21, %s28
    %p350 = scmp.eq.s32.totalorder %s349, 0
    %s352 = sadd.s32 %s351, 1
    %s353 = scalar_select %p350, %s351, %s352
    %p356 = pneg %p350
    %p357 = scmp.eq.s32.totalorder %s21, 1
    %p358 = por %p356, %p357
    %p359 = scmp.ne.s32.totalorder %s351, %s354
    %p360 = scmp.eq.s32.totalorder %s21, 0
    %p361 = por %p359, %p360
    %p362 = scmp.ne.s32.totalorder %s351, %s354
    %p363 = scmp.eq.s32.totalorder %s26, 1
    %p364 = por %p362, %p363
    %p365 = scmp.ne.s32.totalorder %s354, %s355
    %p366 = scmp.eq.s32.totalorder %s26, 0
    %p367 = por %p365, %p366
    %p368 = scmp.ne.s32.totalorder %s354, %s355
    %p369 = scmp.eq.s32.totalorder %s27, 1
    %p370 = por %p368, %p369
    %p372 = scmp.ne.s32.totalorder %s355, %s371
    %p373 = scmp.eq.s32.totalorder %s27, 0
    %p374 = por %p372, %p373
    %p375 = scmp.le.s32.totalorder 1, %s21
    %p376 = scmp.lt.s32.totalorder %s21, 3
    %p377 = pnand %p375, %p376
    %p378 = pneg %p377
    // Predicated region
    $region9: #{tpu_custom_call.1} parent=5 // pred_check
      _
    $region10: #{tpu_custom_call.1} parent=5 // pred_check_branch
      %380 = sbr.rel (%p377) target = $region12
    $region11: #{tpu_custom_call.1} parent=5 // pred_region
      %s381 = ssub.s32 %s21, 1
      // Predicated region
      $region13: #{tpu_custom_call.1} parent=11 // pred_check
        %p382 = pneg %p68
      $region14: #{tpu_custom_call.1} parent=11 // pred_check_branch
        %384 = sbr.rel (%p382) target = $region16
      $region15: #{tpu_custom_call.1} parent=11 // pred_region
        _
      $region16: #{tpu_custom_call.1} parent=11 // pred_fallthru
        _
      // Predicated region
      $region17: #{tpu_custom_call.1} parent=11 // pred_check
        %p385 = pneg %p89
      $region18: #{tpu_custom_call.1} parent=11 // pred_check_branch
        %387 = sbr.rel (%p385) target = $region20
      $region19: #{tpu_custom_call.1} parent=11 // pred_region
        _
      $region20: #{tpu_custom_call.1} parent=11 // pred_fallthru
        _
      // Predicated region
      $region21: #{tpu_custom_call.1} parent=11 // pred_check
        %p388 = pneg %p110
      $region22: #{tpu_custom_call.1} parent=11 // pred_check_branch
        %390 = sbr.rel (%p388) target = $region24
      $region23: #{tpu_custom_call.1} parent=11 // pred_region
        _
      $region24: #{tpu_custom_call.1} parent=11 // pred_fallthru
        _
      // Predicated region
      $region25: #{tpu_custom_call.1} parent=11 // pred_check
        %p391 = pneg %p131
      $region26: #{tpu_custom_call.1} parent=11 // pred_check_branch
        %393 = sbr.rel (%p391) target = $region28
      $region27: #{tpu_custom_call.1} parent=11 // pred_region
        _
      $region28: #{tpu_custom_call.1} parent=11 // pred_fallthru
        _
      // Predicated region
      $region29: #{tpu_custom_call.1} parent=11 // pred_check
        %p394 = pneg %p152
      $region30: #{tpu_custom_call.1} parent=11 // pred_check_branch
        %396 = sbr.rel (%p394) target = $region32
      $region31: #{tpu_custom_call.1} parent=11 // pred_region
        _
      $region32: #{tpu_custom_call.1} parent=11 // pred_fallthru
        _
      // Predicated region
      $region33: #{tpu_custom_call.1} parent=11 // pred_check
        %p397 = pneg %p173
      $region34: #{tpu_custom_call.1} parent=11 // pred_check_branch
        %399 = sbr.rel (%p397) target = $region36
      $region35: #{tpu_custom_call.1} parent=11 // pred_region
        _
      $region36: #{tpu_custom_call.1} parent=11 // pred_fallthru
        _
      // Predicated region
      $region37: #{tpu_custom_call.1} parent=11 // pred_check
        %p400 = pneg %p194
      $region38: #{tpu_custom_call.1} parent=11 // pred_check_branch
        %402 = sbr.rel (%p400) target = $region40
      $region39: #{tpu_custom_call.1} parent=11 // pred_region
        _
      $region40: #{tpu_custom_call.1} parent=11 // pred_fallthru
        _
      // Predicated region
      $region41: #{tpu_custom_call.1} parent=11 // pred_check
        %p403 = pneg %p215
      $region42: #{tpu_custom_call.1} parent=11 // pred_check_branch
        %405 = sbr.rel (%p403) target = $region44
      $region43: #{tpu_custom_call.1} parent=11 // pred_region
        _
      $region44: #{tpu_custom_call.1} parent=11 // pred_fallthru
        _
      // Predicated region
      $region45: #{tpu_custom_call.1} parent=11 // pred_check
        %p406 = pneg %p236
      $region46: #{tpu_custom_call.1} parent=11 // pred_check_branch
        %408 = sbr.rel (%p406) target = $region48
      $region47: #{tpu_custom_call.1} parent=11 // pred_region
        _
      $region48: #{tpu_custom_call.1} parent=11 // pred_fallthru
        _
      // Predicated region
      $region49: #{tpu_custom_call.1} parent=11 // pred_check
        %p409 = pneg %p257
      $region50: #{tpu_custom_call.1} parent=11 // pred_check_branch
        %411 = sbr.rel (%p409) target = $region52
      $region51: #{tpu_custom_call.1} parent=11 // pred_region
        _
      $region52: #{tpu_custom_call.1} parent=11 // pred_fallthru
        _
      // Predicated region
      $region53: #{tpu_custom_call.1} parent=11 // pred_check
        %p412 = pneg %p278
      $region54: #{tpu_custom_call.1} parent=11 // pred_check_branch
        %414 = sbr.rel (%p412) target = $region56
      $region55: #{tpu_custom_call.1} parent=11 // pred_region
        _
      $region56: #{tpu_custom_call.1} parent=11 // pred_fallthru
        _
      // Predicated region
      $region57: #{tpu_custom_call.1} parent=11 // pred_check
        %p415 = pneg %p299
      $region58: #{tpu_custom_call.1} parent=11 // pred_check_branch
        %417 = sbr.rel (%p415) target = $region60
      $region59: #{tpu_custom_call.1} parent=11 // pred_region
        _
      $region60: #{tpu_custom_call.1} parent=11 // pred_fallthru
        _
      // Predicated region
      $region61: #{tpu_custom_call.1} parent=11 // pred_check
        %p418 = pneg %p320
      $region62: #{tpu_custom_call.1} parent=11 // pred_check_branch
        %420 = sbr.rel (%p418) target = $region64
      $region63: #{tpu_custom_call.1} parent=11 // pred_region
        _
      $region64: #{tpu_custom_call.1} parent=11 // pred_fallthru
        _
      // Predicated region
      $region65: #{tpu_custom_call.1} parent=11 // pred_check
        %p421 = pneg %p341
      $region66: #{tpu_custom_call.1} parent=11 // pred_check_branch
        %423 = sbr.rel (%p421) target = $region68
      $region67: #{tpu_custom_call.1} parent=11 // pred_region
        _
      $region68: #{tpu_custom_call.1} parent=11 // pred_fallthru
        _
    $region12: #{tpu_custom_call.1} parent=5 // pred_fallthru
      _
    %p424 = scmp.lt.s32.totalorder %s21, 2
    // Predicated region
    $region69: #{tpu_custom_call.1} parent=5 // pred_check
      %p425 = pneg %p424
    $region70: #{tpu_custom_call.1} parent=5 // pred_check_branch
      %427 = sbr.rel (%p425) target = $region72
    $region71: #{tpu_custom_call.1} parent=5 // pred_region
      // Predicated region
      $region73: #{tpu_custom_call.1} parent=71 // pred_check
        %p428 = pneg %p41
      $region74: #{tpu_custom_call.1} parent=71 // pred_check_branch
        %430 = sbr.rel (%p428) target = $region76
      $region75: #{tpu_custom_call.1} parent=71 // pred_region
        %p431 = scmp.lt.s32.totalorder %s21, 1
        %s432 = scalar_select %p431, %s21, 1
        %s433 = smul.addr %s432, 8
        %s434 = smul.addr %s433, 8
        %s435 = scalar_lea.vmem %s0, %s434
      $region76: #{tpu_custom_call.1} parent=71 // pred_fallthru
        _
    $region72: #{tpu_custom_call.1} parent=5 // pred_fallthru
      _
    %p436 = scmp.le.s32.totalorder 1, %s21
    %p437 = scmp.lt.s32.totalorder %s21, 3
    %p438 = pnand %p436, %p437
    %p439 = pneg %p438
    // Predicated region
    $region77: #{tpu_custom_call.1} parent=5 // pred_check
      _
    $region78: #{tpu_custom_call.1} parent=5 // pred_check_branch
      %441 = sbr.rel (%p438) target = $region80
    $region79: #{tpu_custom_call.1} parent=5 // pred_region
      %s442 = ssub.s32 %s21, 1
      %p443 = scmp.lt.s32.totalorder %s26, 1
      %s444 = scalar_select %p443, %s26, 1
      %s445 = smul.addr %s444, 8
      %s446 = smul.addr %s445, 8
      %s447 = scalar_lea.vmem %s0, %s446
      %p448 = pneg %p47
      %p449 = pneg %p44
      %p450 = pneg %p68
      %p451 = pneg %p65
      %p452 = pneg %p89
      %p453 = pneg %p86
      %p454 = pneg %p110
      %p455 = pneg %p107
      %p456 = pneg %p131
      %p457 = pneg %p128
      %p458 = pneg %p152
      %p459 = pneg %p149
      %p460 = pneg %p173
      %p461 = pneg %p170
      %p462 = pneg %p194
      %p463 = pneg %p191
      %p464 = pneg %p215
      %p465 = pneg %p212
      %p466 = pneg %p236
      %p467 = pneg %p233
      %p468 = pneg %p257
      %p469 = pneg %p254
      %p470 = pneg %p278
      %p471 = pneg %p275
      %p472 = pneg %p299
      %p473 = pneg %p296
      %p474 = pneg %p320
      %p475 = pneg %p317
      %p476 = pneg %p341
      %p477 = pneg %p338
      %p478 = pneg %p367
      %p479 = pneg %p364
      %p480 = scmp.lt.s32.totalorder %s26, 1
      %s481 = scalar_select %p480, %s26, 1
      %s482 = smul.addr %s481, 8
      %s483 = smul.addr %s482, 8
      %s484 = scalar_lea.vmem %s15, %s483
      %p485 = scmp.lt.s32.totalorder %s26, 1
      %s486 = scalar_select %p485, %s26, 1
      %s487 = smul.addr %s486, 8
      %s488 = smul.addr %s487, 8
      %s489 = scalar_lea.vmem %s0, %s488
      %p490 = scmp.lt.s32.totalorder %s26, 1
      %s491 = scalar_select %p490, %s26, 1
      %s492 = smul.addr %s491, 8
      %s493 = smul.addr %s492, 8
      %s494 = scalar_lea.vmem %s15, %s493
      %v495 = vld [vmem:[%s489] sm:$0xff]
      %v496 = vld [vmem:[%s489 + $0x8] sm:$0xff]
      %v497 = vld [vmem:[%s489 + $0x10] sm:$0xff]
      %v498 = vld [vmem:[%s489 + $0x18] sm:$0xff]
      %v499 = vld [vmem:[%s489 + $0x20] sm:$0xff]
      %v500 = vld [vmem:[%s489 + $0x28] sm:$0xff]
      %v501 = vld [vmem:[%s489 + $0x30] sm:$0xff]
      %v502 = vld [vmem:[%s489 + $0x38] sm:$0xff]
      %v503 = vld [vmem:[%s1] sm:$0x1]
      %v504 = vld [vmem:[%s2] sm:$0x1]
      %vm505 = vcmask 261120
      %v506 = vsel %vm505, %v495, 0.0
      %507 = vadd.xlane.f32.xlu0 %v506
      %v508 = vpop.xlane.xlu0 %507
      %v509 = vsel %vm505, %v496, 0.0
      %510 = vadd.xlane.f32.xlu0 %v509
      %v511 = vpop.xlane.xlu0 %510
      %v512 = vsel %vm505, %v497, 0.0
      %513 = vadd.xlane.f32.xlu0 %v512
      %v514 = vpop.xlane.xlu0 %513
      %v515 = vsel %vm505, %v498, 0.0
      %516 = vadd.xlane.f32.xlu0 %v515
      %v517 = vpop.xlane.xlu0 %516
      %v518 = vsel %vm505, %v499, 0.0
      %519 = vadd.xlane.f32.xlu0 %v518
      %v520 = vpop.xlane.xlu0 %519
      %v521 = vsel %vm505, %v500, 0.0
      %522 = vadd.xlane.f32.xlu0 %v521
      %v523 = vpop.xlane.xlu0 %522
      %v524 = vsel %vm505, %v501, 0.0
      %525 = vadd.xlane.f32.xlu0 %v524
      %v526 = vpop.xlane.xlu0 %525
      %v527 = vsel %vm505, %v502, 0.0
      %528 = vadd.xlane.f32.xlu0 %v527
      %v529 = vpop.xlane.xlu0 %528
      %v530 = vrcp.pop 32.0
      %v531 = vmul.f32 %v508, %v530
      %v532 = vmul.f32 %v511, %v530
      %v533 = vmul.f32 %v514, %v530
      %v534 = vmul.f32 %v517, %v530
      %v535 = vmul.f32 %v520, %v530
      %v536 = vmul.f32 %v523, %v530
      %v537 = vmul.f32 %v526, %v530
      %v538 = vmul.f32 %v529, %v530
      %v539 = vsub.f32 %v495, %v531
      %v540 = vsub.f32 %v496, %v532
      %v541 = vsub.f32 %v497, %v533
      %v542 = vsub.f32 %v498, %v534
      %v543 = vsub.f32 %v499, %v535
      %v544 = vsub.f32 %v500, %v536
      %v545 = vsub.f32 %v501, %v537
      %v546 = vsub.f32 %v502, %v538
      %v547 = vmul.f32 %v539, %v539
      %v548 = vmul.f32 %v540, %v540
      %v549 = vmul.f32 %v541, %v541
      %v550 = vmul.f32 %v542, %v542
      %v551 = vmul.f32 %v543, %v543
      %v552 = vmul.f32 %v544, %v544
      %v553 = vmul.f32 %v545, %v545
      %v554 = vmul.f32 %v546, %v546
      %v555 = vsel %vm505, %v547, 0.0
      %556 = vadd.xlane.f32.xlu0 %v555
      %v557 = vpop.xlane.xlu0 %556
      %v558 = vsel %vm505, %v548, 0.0
      %559 = vadd.xlane.f32.xlu0 %v558
      %v560 = vpop.xlane.xlu0 %559
      %v561 = vsel %vm505, %v549, 0.0
      %562 = vadd.xlane.f32.xlu0 %v561
      %v563 = vpop.xlane.xlu0 %562
      %v564 = vsel %vm505, %v550, 0.0
      %565 = vadd.xlane.f32.xlu0 %v564
      %v566 = vpop.xlane.xlu0 %565
      %v567 = vsel %vm505, %v551, 0.0
      %568 = vadd.xlane.f32.xlu0 %v567
      %v569 = vpop.xlane.xlu0 %568
      %v570 = vsel %vm505, %v552, 0.0
      %571 = vadd.xlane.f32.xlu0 %v570
      %v572 = vpop.xlane.xlu0 %571
      %v573 = vsel %vm505, %v553, 0.0
      %574 = vadd.xlane.f32.xlu0 %v573
      %v575 = vpop.xlane.xlu0 %574
      %v576 = vsel %vm505, %v554, 0.0
      %577 = vadd.xlane.f32.xlu0 %v576
      %v578 = vpop.xlane.xlu0 %577
      %v579 = vmul.f32 %v557, %v530
      %v580 = vmul.f32 %v560, %v530
      %v581 = vmul.f32 %v563, %v530
      %v582 = vmul.f32 %v566, %v530
      %v583 = vmul.f32 %v569, %v530
      %v584 = vmul.f32 %v572, %v530
      %v585 = vmul.f32 %v575, %v530
      %v586 = vmul.f32 %v578, %v530
      %v587 = vadd.f32 %v579, 1e-05
      %v588 = vadd.f32 %v580, 1e-05
      %v589 = vadd.f32 %v581, 1e-05
      %v590 = vadd.f32 %v582, 1e-05
      %v591 = vadd.f32 %v583, 1e-05
      %v592 = vadd.f32 %v584, 1e-05
      %v593 = vadd.f32 %v585, 1e-05
      %v594 = vadd.f32 %v586, 1e-05
      %v595 = vrsqrt.pop %v587
      %v596 = vrsqrt.pop %v588
      %v597 = vrsqrt.pop %v589
      %v598 = vrsqrt.pop %v590
      %v599 = vrsqrt.pop %v591
      %v600 = vrsqrt.pop %v592
      %v601 = vrsqrt.pop %v593
      %v602 = vrsqrt.pop %v594
      %v603 = vmul.f32 %v539, %v595
      %v604 = vmul.f32 %v540, %v596
      %v605 = vmul.f32 %v541, %v597
      %v606 = vmul.f32 %v542, %v598
      %v607 = vmul.f32 %v543, %v599
      %v608 = vmul.f32 %v544, %v600
      %v609 = vmul.f32 %v545, %v601
      %v610 = vmul.f32 %v546, %v602
      %v612 = vlaneseq
      %v613 = vshrl.u32 %v612, 7
      %v614 = vsub.s32 0, %v613
      %v615 = vrot.slane %v503, %v614
      %v617 = vmul.f32 %v603, %v615
      %v618 = vmul.f32 %v604, %v615
      %v619 = vmul.f32 %v605, %v615
      %v620 = vmul.f32 %v606, %v615
      %v621 = vmul.f32 %v607, %v615
      %v622 = vmul.f32 %v608, %v615
      %v623 = vmul.f32 %v609, %v615
      %v624 = vmul.f32 %v610, %v615
      %v626 = vlaneseq
      %v627 = vshrl.u32 %v626, 7
      %v628 = vsub.s32 0, %v627
      %v629 = vrot.slane %v504, %v628
      %v631 = vadd.f32 %v617, %v629
      %v632 = vadd.f32 %v618, %v629
      %v633 = vadd.f32 %v619, %v629
      %v634 = vadd.f32 %v620, %v629
      %v635 = vadd.f32 %v621, %v629
      %v636 = vadd.f32 %v622, %v629
      %v637 = vadd.f32 %v623, %v629
      %v638 = vadd.f32 %v624, %v629
      %v639 = vld [vmem:[%s4] sm:$0xff]
      %v640 = vld [vmem:[%s4 + $0x8] sm:$0xff]
      %v641 = vld [vmem:[%s4 + $0x10] sm:$0xff]
      %v642 = vld [vmem:[%s4 + $0x18] sm:$0xff]
      %v644 = vsel %vm505, %v631, 0
      %v647 = vsel %vm505, %v632, 0
      %v650 = vsel %vm505, %v633, 0
      %v653 = vsel %vm505, %v634, 0
      %v656 = vsel %vm505, %v635, 0
      %v659 = vsel %vm505, %v636, 0
      %v662 = vsel %vm505, %v637, 0
      %v665 = vsel %vm505, %v638, 0
      %667 = vmatprep.subr.mxu0 0.0
      %668 = vmatpush1.msra.mxu0 0.0
      %669 = vmatprep.subr.mxu0 0.0
      %670 = vmatpush1.msra.mxu0 0.0
      %671 = vmatprep.subr.mxu0 0.0
      %672 = vmatpush1.msra.mxu0 0.0
      %673 = vmatprep.subr.mxu0 0.0
      %674 = vmatpush1.msra.mxu0 0.0
      %675 = vmatprep.subr.mxu0 0.0
      %676 = vmatpush1.msra.mxu0 0.0
      %677 = vmatprep.subr.mxu0 0.0
      %678 = vmatpush1.msra.mxu0 0.0
      %679 = vmatprep.subr.mxu0 0.0
      %680 = vmatpush1.msra.mxu0 0.0
      %681 = vmatprep.subr.mxu0 0.0
      %682 = vmatpush1.msra.mxu0 0.0
      %683 = vmatprep.subr.mxu0 0.0
      %684 = vmatpush1.msra.mxu0 0.0
      %685 = vmatprep.subr.mxu0 0.0
      %686 = vmatpush1.msra.mxu0 0.0
      %687 = vmatprep.subr.mxu0 0.0
      %688 = vmatpush1.msra.mxu0 0.0
      %689 = vmatprep.subr.mxu0 0.0
      %690 = vmatpush1.msra.mxu0 0.0
      %691 = vmatprep.subr.mxu0 0.0
      %692 = vmatpush1.msra.mxu0 %v642
      %693 = vmatprep.subr.mxu0 0.0
      %694 = vmatpush1.msra.mxu0 %v641
      %695 = vmatprep.subr.mxu0 0.0
      %696 = vmatpush1.msra.mxu0 %v640
      %697 = vmatprep.subr.mxu0 0.0
      %698 = vmatpush1.msra.mxu0 %v639
      %699 = vmatprep.subr.mxu0 0.0
      %700 = vmatpush2.msra.mxu0 0.0
      %701 = vmatprep.subr.mxu0 0.0
      %702 = vmatpush2.msra.mxu0 0.0
      %703 = vmatprep.subr.mxu0 0.0
      %704 = vmatpush2.msra.mxu0 0.0
      %705 = vmatprep.subr.mxu0 0.0
      %706 = vmatpush2.msra.mxu0 0.0
      %707 = vmatprep.subr.mxu0 0.0
      %708 = vmatpush2.msra.mxu0 0.0
      %709 = vmatprep.subr.mxu0 0.0
      %710 = vmatpush2.msra.mxu0 0.0
      %711 = vmatprep.subr.mxu0 0.0
      %712 = vmatpush2.msra.mxu0 0.0
      %713 = vmatprep.subr.mxu0 0.0
      %714 = vmatpush2.msra.mxu0 0.0
      %715 = vmatprep.subr.mxu0 0.0
      %716 = vmatpush2.msra.mxu0 0.0
      %717 = vmatprep.subr.mxu0 0.0
      %718 = vmatpush2.msra.mxu0 0.0
      %719 = vmatprep.subr.mxu0 0.0
      %720 = vmatpush2.msra.mxu0 0.0
      %721 = vmatprep.subr.mxu0 0.0
      %722 = vmatpush2.msra.mxu0 0.0
      %723 = vmatprep.subr.mxu0 0.0
      %724 = vmatpush2.msra.mxu0 0.0
      %725 = vmatprep.subr.mxu0 0.0
      %726 = vmatpush2.msra.mxu0 0.0
      %727 = vmatprep.subr.mxu0 0.0
      %728 = vmatpush2.msra.mxu0 0.0
      %729 = vmatprep.subr.mxu0 0.0
      %730 = vmatpush2.msra.mxu0 0.0
      %731 = vmatprep.mubr.f32.mxu0 0.0
      %732 = vmatmul.mubr.f32.gmra.mxu0 %v644
      %v733 = vpop.f32.mrf.mxu0
      %v734 = vadd.f32 0.0, %v733
      %v735 = vpop.f32.mrf.mxu0
      %736 = vmatprep.mubr.f32.mxu0 0.0
      %737 = vmatmul.mubr.f32.gmra.mxu0 %v647
      %v738 = vpop.f32.mrf.mxu0
      %v739 = vadd.f32 0.0, %v738
      %v740 = vpop.f32.mrf.mxu0
      %741 = vmatprep.mubr.f32.mxu0 0.0
      %742 = vmatmul.mubr.f32.gmra.mxu0 %v650
      %v743 = vpop.f32.mrf.mxu0
      %v744 = vadd.f32 0.0, %v743
      %v745 = vpop.f32.mrf.mxu0
      %746 = vmatprep.mubr.f32.mxu0 0.0
      %747 = vmatmul.mubr.f32.gmra.mxu0 %v653
      %v748 = vpop.f32.mrf.mxu0
      %v749 = vadd.f32 0.0, %v748
      %v750 = vpop.f32.mrf.mxu0
      %751 = vmatprep.mubr.f32.mxu0 0.0
      %752 = vmatmul.mubr.f32.gmra.mxu0 %v656
      %v753 = vpop.f32.mrf.mxu0
      %v754 = vadd.f32 0.0, %v753
      %v755 = vpop.f32.mrf.mxu0
      %756 = vmatprep.mubr.f32.mxu0 0.0
      %757 = vmatmul.mubr.f32.gmra.mxu0 %v659
      %v758 = vpop.f32.mrf.mxu0
      %v759 = vadd.f32 0.0, %v758
      %v760 = vpop.f32.mrf.mxu0
      %761 = vmatprep.mubr.f32.mxu0 0.0
      %762 = vmatmul.mubr.f32.gmra.mxu0 %v662
      %v763 = vpop.f32.mrf.mxu0
      %v764 = vadd.f32 0.0, %v763
      %v765 = vpop.f32.mrf.mxu0
      %766 = vmatprep.mubr.f32.mxu0 0.0
      %767 = vmatmul.mubr.f32.gmra.mxu0 %v665
      %v768 = vpop.f32.mrf.mxu0
      %v769 = vadd.f32 0.0, %v768
      %v770 = vpop.f32.mrf.mxu0
      %771 = vdwg.mxu0
      %v772 = vsel %vm505, %v631, 0.0
      %v773 = vsel %vm505, %v632, 0.0
      %v774 = vadd.f32 %v772, %v773
      %v775 = vrot.slane %v774, 4
      %v776 = vadd.f32 %v774, %v775
      %v777 = vrot.slane %v776, 2
      %v778 = vadd.f32 %v776, %v777
      %v779 = vrot.slane %v778, 1
      %v780 = vadd.f32 %v778, %v779
      %v781 = vsel %vm505, %v633, 0.0
      %v782 = vsel %vm505, %v634, 0.0
      %v783 = vadd.f32 %v781, %v782
      %v784 = vrot.slane %v783, 4
      %v785 = vadd.f32 %v783, %v784
      %v786 = vrot.slane %v785, 2
      %v787 = vadd.f32 %v785, %v786
      %v788 = vrot.slane %v787, 1
      %v789 = vadd.f32 %v787, %v788
      %v790 = vsel %vm505, %v635, 0.0
      %v791 = vsel %vm505, %v636, 0.0
      %v792 = vadd.f32 %v790, %v791
      %v793 = vrot.slane %v792, 4
      %v794 = vadd.f32 %v792, %v793
      %v795 = vrot.slane %v794, 2
      %v796 = vadd.f32 %v794, %v795
      %v797 = vrot.slane %v796, 1
      %v798 = vadd.f32 %v796, %v797
      %v799 = vsel %vm505, %v637, 0.0
      %v800 = vsel %vm505, %v638, 0.0
      %v801 = vadd.f32 %v799, %v800
      %v802 = vrot.slane %v801, 4
      %v803 = vadd.f32 %v801, %v802
      %v804 = vrot.slane %v803, 2
      %v805 = vadd.f32 %v803, %v804
      %v806 = vrot.slane %v805, 1
      %v807 = vadd.f32 %v805, %v806
      %v808 = vrcp.pop 16.0
      %v809 = vmul.f32 %v780, %v808
      %v810 = vmul.f32 %v789, %v808
      %v811 = vmul.f32 %v798, %v808
      %v812 = vmul.f32 %v807, %v808
      %v813 = vld [vmem:[%s3] sm:$0xff]
      %v814 = vld [vmem:[%s3 + $0x8] sm:$0xff]
      %v815 = vld [vmem:[%s3 + $0x10] sm:$0xff]
      %v816 = vld [vmem:[%s3 + $0x18] sm:$0xff]
      %vm821 = vcmask 1041409
      %v822 = vsel %vm821, %v810, %v809
      %vm823 = vcmask 1042434
      %v824 = vsel %vm823, %v811, %v822
      %vm825 = vcmask 1043459
      %v826 = vsel %vm825, %v812, %v824
      %v827 = vsel %vm505, %v826, 0
      %829 = vmatprep.subr.mxu0 0.0
      %830 = vmatpush1.msra.mxu0 0.0
      %831 = vmatprep.subr.mxu0 0.0
      %832 = vmatpush1.msra.mxu0 0.0
      %833 = vmatprep.subr.mxu0 0.0
      %834 = vmatpush1.msra.mxu0 0.0
      %835 = vmatprep.subr.mxu0 0.0
      %836 = vmatpush1.msra.mxu0 0.0
      %837 = vmatprep.subr.mxu0 0.0
      %838 = vmatpush1.msra.mxu0 0.0
      %839 = vmatprep.subr.mxu0 0.0
      %840 = vmatpush1.msra.mxu0 0.0
      %841 = vmatprep.subr.mxu0 0.0
      %842 = vmatpush1.msra.mxu0 0.0
      %843 = vmatprep.subr.mxu0 0.0
      %844 = vmatpush1.msra.mxu0 0.0
      %845 = vmatprep.subr.mxu0 0.0
      %846 = vmatpush1.msra.mxu0 0.0
      %847 = vmatprep.subr.mxu0 0.0
      %848 = vmatpush1.msra.mxu0 0.0
      %849 = vmatprep.subr.mxu0 0.0
      %850 = vmatpush1.msra.mxu0 0.0
      %851 = vmatprep.subr.mxu0 0.0
      %852 = vmatpush1.msra.mxu0 0.0
      %853 = vmatprep.subr.mxu0 0.0
      %854 = vmatpush1.msra.mxu0 %v816
      %855 = vmatprep.subr.mxu0 0.0
      %856 = vmatpush1.msra.mxu0 %v815
      %857 = vmatprep.subr.mxu0 0.0
      %858 = vmatpush1.msra.mxu0 %v814
      %859 = vmatprep.subr.mxu0 0.0
      %860 = vmatpush1.msra.mxu0 %v813
      %861 = vmatprep.subr.mxu0 0.0
      %862 = vmatpush2.msra.mxu0 0.0
      %863 = vmatprep.subr.mxu0 0.0
      %864 = vmatpush2.msra.mxu0 0.0
      %865 = vmatprep.subr.mxu0 0.0
      %866 = vmatpush2.msra.mxu0 0.0
      %867 = vmatprep.subr.mxu0 0.0
      %868 = vmatpush2.msra.mxu0 0.0
      %869 = vmatprep.subr.mxu0 0.0
      %870 = vmatpush2.msra.mxu0 0.0
      %871 = vmatprep.subr.mxu0 0.0
      %872 = vmatpush2.msra.mxu0 0.0
      %873 = vmatprep.subr.mxu0 0.0
      %874 = vmatpush2.msra.mxu0 0.0
      %875 = vmatprep.subr.mxu0 0.0
      %876 = vmatpush2.msra.mxu0 0.0
      %877 = vmatprep.subr.mxu0 0.0
      %878 = vmatpush2.msra.mxu0 0.0
      %879 = vmatprep.subr.mxu0 0.0
      %880 = vmatpush2.msra.mxu0 0.0
      %881 = vmatprep.subr.mxu0 0.0
      %882 = vmatpush2.msra.mxu0 0.0
      %883 = vmatprep.subr.mxu0 0.0
      %884 = vmatpush2.msra.mxu0 0.0
      %885 = vmatprep.subr.mxu0 0.0
      %886 = vmatpush2.msra.mxu0 0.0
      %887 = vmatprep.subr.mxu0 0.0
      %888 = vmatpush2.msra.mxu0 0.0
      %889 = vmatprep.subr.mxu0 0.0
      %890 = vmatpush2.msra.mxu0 0.0
      %891 = vmatprep.subr.mxu0 0.0
      %892 = vmatpush2.msra.mxu0 0.0
      %893 = vmatprep.mubr.f32.mxu0 0.0
      %894 = vmatmul.mubr.f32.gmra.mxu0 %v827
      %v895 = vpop.f32.mrf.mxu0
      %v896 = vadd.f32 0.0, %v895
      %v897 = vpop.f32.mrf.mxu0
      %898 = vdwg.mxu0
      %v899 = vsel %vm505, %v734, 0.0
      %v900 = vsel %vm505, %v739, 0.0
      %v901 = vadd.f32 %v899, %v900
      %v902 = vrot.slane %v901, 4
      %v903 = vadd.f32 %v901, %v902
      %v904 = vrot.slane %v903, 2
      %v905 = vadd.f32 %v903, %v904
      %v906 = vrot.slane %v905, 1
      %v907 = vadd.f32 %v905, %v906
      %v908 = vsel %vm505, %v744, 0.0
      %v909 = vsel %vm505, %v749, 0.0
      %v910 = vadd.f32 %v908, %v909
      %v911 = vrot.slane %v910, 4
      %v912 = vadd.f32 %v910, %v911
      %v913 = vrot.slane %v912, 2
      %v914 = vadd.f32 %v912, %v913
      %v915 = vrot.slane %v914, 1
      %v916 = vadd.f32 %v914, %v915
      %v917 = vsel %vm505, %v754, 0.0
      %v918 = vsel %vm505, %v759, 0.0
      %v919 = vadd.f32 %v917, %v918
      %v920 = vrot.slane %v919, 4
      %v921 = vadd.f32 %v919, %v920
      %v922 = vrot.slane %v921, 2
      %v923 = vadd.f32 %v921, %v922
      %v924 = vrot.slane %v923, 1
      %v925 = vadd.f32 %v923, %v924
      %v926 = vsel %vm505, %v764, 0.0
      %v927 = vsel %vm505, %v769, 0.0
      %v928 = vadd.f32 %v926, %v927
      %v929 = vrot.slane %v928, 4
      %v930 = vadd.f32 %v928, %v929
      %v931 = vrot.slane %v930, 2
      %v932 = vadd.f32 %v930, %v931
      %v933 = vrot.slane %v932, 1
      %v934 = vadd.f32 %v932, %v933
      %v935 = vmul.f32 %v907, %v808
      %v936 = vmul.f32 %v916, %v808
      %v937 = vmul.f32 %v925, %v808
      %v938 = vmul.f32 %v934, %v808
      %v941 = vunpack.c.l.s4 1966171168
      %v942 = vunpack.c.0.s8 %v941
      %v943 = vlaneseq
      %v944 = vshrl.u32 %v943, 7
      %v945 = vsub.s32 %v942, %v944
      %v946 = vrot.slane %v896, %v945
      %v947 = vcombine.high %v946, %v946
      %v949 = vunpack.c.l.s4 1966171168
      %v950 = vunpack.c.0.s8 %v949
      %v951 = vlaneseq
      %v952 = vshrl.u32 %v951, 7
      %v953 = vsub.s32 %v950, %v952
      %v954 = vrot.slane %v946, %v953
      %v956 = vunpack.c.l.s4 1966171168
      %v957 = vunpack.c.0.s8 %v956
      %v958 = vlaneseq
      %v959 = vshrl.u32 %v958, 7
      %v960 = vsub.s32 %v957, %v959
      %v961 = vrot.slane %v947, %v960
      %v962 = vcombine.high %v954, %v954
      %v963 = vcombine.high %v961, %v961
      %v964 = vlaneseq
      %v965 = vshrl.u32 %v964, 7
      %v966 = vsub.s32 0, %v965
      %v967 = vrot.slane %v954, %v966
      %v968 = vlaneseq
      %v969 = vshrl.u32 %v968, 7
      %v970 = vsub.s32 0, %v969
      %v971 = vrot.slane %v961, %v970
      %v972 = vlaneseq
      %v973 = vshrl.u32 %v972, 7
      %v974 = vsub.s32 0, %v973
      %v975 = vrot.slane %v962, %v974
      %v976 = vlaneseq
      %v977 = vshrl.u32 %v976, 7
      %v978 = vsub.s32 0, %v977
      %v979 = vrot.slane %v963, %v978
      %v988 = vsel %vm821, %v936, %v935
      %v989 = vsel %vm823, %v937, %v988
      %v990 = vsel %vm825, %v938, %v989
      %v992 = vmul.f32 %v967, %v990
      %v993 = vmul.f32 %v971, %v990
      %v994 = vmul.f32 %v975, %v990
      %v995 = vmul.f32 %v979, %v990
      %v996 = vld [vmem:[%s7] sm:$0xff]
      %v997 = vld [vmem:[%s7 + $0x8] sm:$0xff]
      %v998 = vld [vmem:[%s7 + $0x10] sm:$0xff]
      %v999 = vld [vmem:[%s7 + $0x18] sm:$0xff]
      %v1004 = vcombine.low %v992, %v993
      %v1005 = vcombine.low %v994, %v995
      %v1006 = vsel %vm505, %v1004, 0
      %v1008 = vsel %vm505, %v1005, 0
      %1010 = vmatprep.subr.mxu0 0.0
      %1011 = vmatpush1.msra.mxu0 0.0
      %1012 = vmatprep.subr.mxu0 0.0
      %1013 = vmatpush1.msra.mxu0 0.0
      %1014 = vmatprep.subr.mxu0 0.0
      %1015 = vmatpush1.msra.mxu0 0.0
      %1016 = vmatprep.subr.mxu0 0.0
      %1017 = vmatpush1.msra.mxu0 0.0
      %1018 = vmatprep.subr.mxu0 0.0
      %1019 = vmatpush1.msra.mxu0 0.0
      %1020 = vmatprep.subr.mxu0 0.0
      %1021 = vmatpush1.msra.mxu0 0.0
      %1022 = vmatprep.subr.mxu0 0.0
      %1023 = vmatpush1.msra.mxu0 0.0
      %1024 = vmatprep.subr.mxu0 0.0
      %1025 = vmatpush1.msra.mxu0 0.0
      %1026 = vmatprep.subr.mxu0 0.0
      %1027 = vmatpush1.msra.mxu0 0.0
      %1028 = vmatprep.subr.mxu0 0.0
      %1029 = vmatpush1.msra.mxu0 0.0
      %1030 = vmatprep.subr.mxu0 0.0
      %1031 = vmatpush1.msra.mxu0 0.0
      %1032 = vmatprep.subr.mxu0 0.0
      %1033 = vmatpush1.msra.mxu0 0.0
      %1034 = vmatprep.subr.mxu0 0.0
      %1035 = vmatpush1.msra.mxu0 %v999
      %1036 = vmatprep.subr.mxu0 0.0
      %1037 = vmatpush1.msra.mxu0 %v998
      %1038 = vmatprep.subr.mxu0 0.0
      %1039 = vmatpush1.msra.mxu0 %v997
      %1040 = vmatprep.subr.mxu0 0.0
      %1041 = vmatpush1.msra.mxu0 %v996
      %1042 = vmatprep.subr.mxu0 0.0
      %1043 = vmatpush2.msra.mxu0 0.0
      %1044 = vmatprep.subr.mxu0 0.0
      %1045 = vmatpush2.msra.mxu0 0.0
      %1046 = vmatprep.subr.mxu0 0.0
      %1047 = vmatpush2.msra.mxu0 0.0
      %1048 = vmatprep.subr.mxu0 0.0
      %1049 = vmatpush2.msra.mxu0 0.0
      %1050 = vmatprep.subr.mxu0 0.0
      %1051 = vmatpush2.msra.mxu0 0.0
      %1052 = vmatprep.subr.mxu0 0.0
      %1053 = vmatpush2.msra.mxu0 0.0
      %1054 = vmatprep.subr.mxu0 0.0
      %1055 = vmatpush2.msra.mxu0 0.0
      %1056 = vmatprep.subr.mxu0 0.0
      %1057 = vmatpush2.msra.mxu0 0.0
      %1058 = vmatprep.subr.mxu0 0.0
      %1059 = vmatpush2.msra.mxu0 0.0
      %1060 = vmatprep.subr.mxu0 0.0
      %1061 = vmatpush2.msra.mxu0 0.0
      %1062 = vmatprep.subr.mxu0 0.0
      %1063 = vmatpush2.msra.mxu0 0.0
      %1064 = vmatprep.subr.mxu0 0.0
      %1065 = vmatpush2.msra.mxu0 0.0
      %1066 = vmatprep.subr.mxu0 0.0
      %1067 = vmatpush2.msra.mxu0 0.0
      %1068 = vmatprep.subr.mxu0 0.0
      %1069 = vmatpush2.msra.mxu0 0.0
      %1070 = vmatprep.subr.mxu0 0.0
      %1071 = vmatpush2.msra.mxu0 0.0
      %1072 = vmatprep.subr.mxu0 0.0
      %1073 = vmatpush2.msra.mxu0 0.0
      %1074 = vmatprep.mubr.f32.mxu0 0.0
      %1075 = vmatmul.mubr.f32.gmra.mxu0 %v1006
      %v1076 = vpop.f32.mrf.mxu0
      %v1077 = vadd.f32 0.0, %v1076
      %v1078 = vpop.f32.mrf.mxu0
      %1079 = vmatprep.mubr.f32.mxu0 0.0
      %1080 = vmatmul.mubr.f32.gmra.mxu0 %v1008
      %v1081 = vpop.f32.mrf.mxu0
      %v1082 = vadd.f32 0.0, %v1081
      %v1083 = vpop.f32.mrf.mxu0
      %1084 = vdwg.mxu0
      %v1085 = vmul.f32 %v1077, 0.35355338
      %v1086 = vmul.f32 %v1082, 0.35355338
      %v1089 = vcombine.high %v1085, %v1085
      %v1090 = vcombine.high %v1086, %v1086
      %vm1093 = vcmask 27648
      %v1094 = vsel %vm1093, %v1085, -inf
      %v1095 = vrot.slane %v1094, 4
      %v1096 = vmax.f32 %v1094, %v1095
      %v1097 = vrot.slane %v1096, 2
      %v1098 = vmax.f32 %v1096, %v1097
      %v1099 = vrot.slane %v1098, 1
      %v1100 = vmax.f32 %v1098, %v1099
      %v1101 = vsel %vm1093, %v1089, -inf
      %v1102 = vrot.slane %v1101, 4
      %v1103 = vmax.f32 %v1101, %v1102
      %v1104 = vrot.slane %v1103, 2
      %v1105 = vmax.f32 %v1103, %v1104
      %v1106 = vrot.slane %v1105, 1
      %v1107 = vmax.f32 %v1105, %v1106
      %v1108 = vsel %vm1093, %v1086, -inf
      %v1109 = vrot.slane %v1108, 4
      %v1110 = vmax.f32 %v1108, %v1109
      %v1111 = vrot.slane %v1110, 2
      %v1112 = vmax.f32 %v1110, %v1111
      %v1113 = vrot.slane %v1112, 1
      %v1114 = vmax.f32 %v1112, %v1113
      %v1115 = vsel %vm1093, %v1090, -inf
      %v1116 = vrot.slane %v1115, 4
      %v1117 = vmax.f32 %v1115, %v1116
      %v1118 = vrot.slane %v1117, 2
      %v1119 = vmax.f32 %v1117, %v1118
      %v1120 = vrot.slane %v1119, 1
      %v1121 = vmax.f32 %v1119, %v1120
      %v1122 = vsub.f32 %v1085, %v1100
      %v1123 = vsub.f32 %v1089, %v1107
      %v1124 = vsub.f32 %v1086, %v1114
      %v1125 = vsub.f32 %v1090, %v1121
      %v1126 = vmul.f32 %v1122, 1.442695
      %v1127 = vpow.pop %v1126
      %v1128 = vmul.f32 %v1123, 1.442695
      %v1129 = vpow.pop %v1128
      %v1130 = vmul.f32 %v1124, 1.442695
      %v1131 = vpow.pop %v1130
      %v1132 = vmul.f32 %v1125, 1.442695
      %v1133 = vpow.pop %v1132
      %v1134 = vsel %vm1093, %v1127, 0.0
      %v1135 = vrot.slane %v1134, 4
      %v1136 = vadd.f32 %v1134, %v1135
      %v1137 = vrot.slane %v1136, 2
      %v1138 = vadd.f32 %v1136, %v1137
      %v1139 = vrot.slane %v1138, 1
      %v1140 = vadd.f32 %v1138, %v1139
      %v1141 = vsel %vm1093, %v1129, 0.0
      %v1142 = vrot.slane %v1141, 4
      %v1143 = vadd.f32 %v1141, %v1142
      %v1144 = vrot.slane %v1143, 2
      %v1145 = vadd.f32 %v1143, %v1144
      %v1146 = vrot.slane %v1145, 1
      %v1147 = vadd.f32 %v1145, %v1146
      %v1148 = vsel %vm1093, %v1131, 0.0
      %v1149 = vrot.slane %v1148, 4
      %v1150 = vadd.f32 %v1148, %v1149
      %v1151 = vrot.slane %v1150, 2
      %v1152 = vadd.f32 %v1150, %v1151
      %v1153 = vrot.slane %v1152, 1
      %v1154 = vadd.f32 %v1152, %v1153
      %v1155 = vsel %vm1093, %v1133, 0.0
      %v1156 = vrot.slane %v1155, 4
      %v1157 = vadd.f32 %v1155, %v1156
      %v1158 = vrot.slane %v1157, 2
      %v1159 = vadd.f32 %v1157, %v1158
      %v1160 = vrot.slane %v1159, 1
      %v1161 = vadd.f32 %v1159, %v1160
      %v1162 = vrcp.pop %v1140
      %v1163 = vrcp.pop %v1147
      %v1164 = vrcp.pop %v1154
      %v1165 = vrcp.pop %v1161
      %v1166 = vmul.f32 %v1127, %v1162
      %v1167 = vmul.f32 %v1129, %v1163
      %v1168 = vmul.f32 %v1131, %v1164
      %v1169 = vmul.f32 %v1133, %v1165
      %v1170 = vld [vmem:[%s8] sm:$0xf]
      %v1175 = vcombine.low %v1166, %v1167
      %v1176 = vcombine.low %v1168, %v1169
      %vm1177 = vcmask 31744
      %v1178 = vsel %vm1177, %v1175, 0
      %v1180 = vsel %vm1177, %v1176, 0
      %vm1182 = vcmask 1043456
      %v1184 = vsel %vm1182, %v1170, 0
      %1186 = vmatprep.subr.mxu0 0.0
      %1187 = vmatpush1.msra.mxu0 0.0
      %1188 = vmatprep.subr.mxu0 0.0
      %1189 = vmatpush1.msra.mxu0 0.0
      %1190 = vmatprep.subr.mxu0 0.0
      %1191 = vmatpush1.msra.mxu0 0.0
      %1192 = vmatprep.subr.mxu0 0.0
      %1193 = vmatpush1.msra.mxu0 0.0
      %1194 = vmatprep.subr.mxu0 0.0
      %1195 = vmatpush1.msra.mxu0 0.0
      %1196 = vmatprep.subr.mxu0 0.0
      %1197 = vmatpush1.msra.mxu0 0.0
      %1198 = vmatprep.subr.mxu0 0.0
      %1199 = vmatpush1.msra.mxu0 0.0
      %1200 = vmatprep.subr.mxu0 0.0
      %1201 = vmatpush1.msra.mxu0 0.0
      %1202 = vmatprep.subr.mxu0 0.0
      %1203 = vmatpush1.msra.mxu0 0.0
      %1204 = vmatprep.subr.mxu0 0.0
      %1205 = vmatpush1.msra.mxu0 0.0
      %1206 = vmatprep.subr.mxu0 0.0
      %1207 = vmatpush1.msra.mxu0 0.0
      %1208 = vmatprep.subr.mxu0 0.0
      %1209 = vmatpush1.msra.mxu0 0.0
      %1210 = vmatprep.subr.mxu0 0.0
      %1211 = vmatpush1.msra.mxu0 0.0
      %1212 = vmatprep.subr.mxu0 0.0
      %1213 = vmatpush1.msra.mxu0 0.0
      %1214 = vmatprep.subr.mxu0 0.0
      %1215 = vmatpush1.msra.mxu0 0.0
      %1216 = vmatprep.subr.mxu0 0.0
      %1217 = vmatpush1.msra.mxu0 %v1184
      %1218 = vmatprep.subr.mxu0 0.0
      %1219 = vmatpush2.msra.mxu0 0.0
      %1220 = vmatprep.subr.mxu0 0.0
      %1221 = vmatpush2.msra.mxu0 0.0
      %1222 = vmatprep.subr.mxu0 0.0
      %1223 = vmatpush2.msra.mxu0 0.0
      %1224 = vmatprep.subr.mxu0 0.0
      %1225 = vmatpush2.msra.mxu0 0.0
      %1226 = vmatprep.subr.mxu0 0.0
      %1227 = vmatpush2.msra.mxu0 0.0
      %1228 = vmatprep.subr.mxu0 0.0
      %1229 = vmatpush2.msra.mxu0 0.0
      %1230 = vmatprep.subr.mxu0 0.0
      %1231 = vmatpush2.msra.mxu0 0.0
      %1232 = vmatprep.subr.mxu0 0.0
      %1233 = vmatpush2.msra.mxu0 0.0
      %1234 = vmatprep.subr.mxu0 0.0
      %1235 = vmatpush2.msra.mxu0 0.0
      %1236 = vmatprep.subr.mxu0 0.0
      %1237 = vmatpush2.msra.mxu0 0.0
      %1238 = vmatprep.subr.mxu0 0.0
      %1239 = vmatpush2.msra.mxu0 0.0
      %1240 = vmatprep.subr.mxu0 0.0
      %1241 = vmatpush2.msra.mxu0 0.0
      %1242 = vmatprep.subr.mxu0 0.0
      %1243 = vmatpush2.msra.mxu0 0.0
      %1244 = vmatprep.subr.mxu0 0.0
      %1245 = vmatpush2.msra.mxu0 0.0
      %1246 = vmatprep.subr.mxu0 0.0
      %1247 = vmatpush2.msra.mxu0 0.0
      %1248 = vmatprep.subr.mxu0 0.0
      %1249 = vmatpush2.msra.mxu0 0.0
      %1250 = vmatprep.mubr.f32.mxu0 0.0
      %1251 = vmatmul.mubr.f32.gmra.mxu0 %v1178
      %v1252 = vpop.f32.mrf.mxu0
      %v1253 = vadd.f32 0.0, %v1252
      %v1254 = vpop.f32.mrf.mxu0
      %1255 = vmatprep.mubr.f32.mxu0 0.0
      %1256 = vmatmul.mubr.f32.gmra.mxu0 %v1180
      %v1257 = vpop.f32.mrf.mxu0
      %v1258 = vadd.f32 0.0, %v1257
      %v1259 = vpop.f32.mrf.mxu0
      %1260 = vdwg.mxu0
      %v1263 = vcombine.high %v1253, %v1253
      %v1264 = vcombine.high %v1258, %v1258
      %v1267 = vlaneseq
      %v1268 = vshrl.u32 %v1267, 7
      %v1269 = vsub.s32 0, %v1268
      %v1270 = vrot.slane %v1253, %v1269
      %v1271 = vlaneseq
      %v1272 = vshrl.u32 %v1271, 7
      %v1273 = vsub.s32 0, %v1272
      %v1274 = vrot.slane %v1263, %v1273
      %v1275 = vlaneseq
      %v1276 = vshrl.u32 %v1275, 7
      %v1277 = vsub.s32 0, %v1276
      %v1278 = vrot.slane %v1258, %v1277
      %v1279 = vlaneseq
      %v1280 = vshrl.u32 %v1279, 7
      %v1281 = vsub.s32 0, %v1280
      %v1282 = vrot.slane %v1264, %v1281
      %v1283 = vmul.f32 %v1270, %v734
      %v1284 = vmul.f32 %v1270, %v739
      %v1285 = vmul.f32 %v1274, %v734
      %v1286 = vmul.f32 %v1274, %v739
      %v1287 = vmul.f32 %v1278, %v734
      %v1288 = vmul.f32 %v1278, %v739
      %v1289 = vmul.f32 %v1282, %v734
      %v1290 = vmul.f32 %v1282, %v739
      %v1291 = vlaneseq
      %v1292 = vshrl.u32 %v1291, 7
      %v1293 = vsub.s32 1, %v1292
      %v1294 = vrot.slane %v1253, %v1293
      %v1295 = vlaneseq
      %v1296 = vshrl.u32 %v1295, 7
      %v1297 = vsub.s32 1, %v1296
      %v1298 = vrot.slane %v1263, %v1297
      %v1299 = vlaneseq
      %v1300 = vshrl.u32 %v1299, 7
      %v1301 = vsub.s32 1, %v1300
      %v1302 = vrot.slane %v1258, %v1301
      %v1303 = vlaneseq
      %v1304 = vshrl.u32 %v1303, 7
      %v1305 = vsub.s32 1, %v1304
      %v1306 = vrot.slane %v1264, %v1305
      %v1307 = vmul.f32 %v1294, %v744
      %v1308 = vmul.f32 %v1294, %v749
      %v1309 = vmul.f32 %v1298, %v744
      %v1310 = vmul.f32 %v1298, %v749
      %v1311 = vmul.f32 %v1302, %v744
      %v1312 = vmul.f32 %v1302, %v749
      %v1313 = vmul.f32 %v1306, %v744
      %v1314 = vmul.f32 %v1306, %v749
      %v1315 = vadd.f32 %v1283, %v1307
      %v1316 = vadd.f32 %v1284, %v1308
      %v1317 = vadd.f32 %v1285, %v1309
      %v1318 = vadd.f32 %v1286, %v1310
      %v1319 = vadd.f32 %v1287, %v1311
      %v1320 = vadd.f32 %v1288, %v1312
      %v1321 = vadd.f32 %v1289, %v1313
      %v1322 = vadd.f32 %v1290, %v1314
      %v1323 = vlaneseq
      %v1324 = vshrl.u32 %v1323, 7
      %v1325 = vsub.s32 2, %v1324
      %v1326 = vrot.slane %v1253, %v1325
      %v1327 = vlaneseq
      %v1328 = vshrl.u32 %v1327, 7
      %v1329 = vsub.s32 2, %v1328
      %v1330 = vrot.slane %v1263, %v1329
      %v1331 = vlaneseq
      %v1332 = vshrl.u32 %v1331, 7
      %v1333 = vsub.s32 2, %v1332
      %v1334 = vrot.slane %v1258, %v1333
      %v1335 = vlaneseq
      %v1336 = vshrl.u32 %v1335, 7
      %v1337 = vsub.s32 2, %v1336
      %v1338 = vrot.slane %v1264, %v1337
      %v1339 = vmul.f32 %v1326, %v754
      %v1340 = vmul.f32 %v1326, %v759
      %v1341 = vmul.f32 %v1330, %v754
      %v1342 = vmul.f32 %v1330, %v759
      %v1343 = vmul.f32 %v1334, %v754
      %v1344 = vmul.f32 %v1334, %v759
      %v1345 = vmul.f32 %v1338, %v754
      %v1346 = vmul.f32 %v1338, %v759
      %v1347 = vadd.f32 %v1315, %v1339
      %v1348 = vadd.f32 %v1316, %v1340
      %v1349 = vadd.f32 %v1317, %v1341
      %v1350 = vadd.f32 %v1318, %v1342
      %v1351 = vadd.f32 %v1319, %v1343
      %v1352 = vadd.f32 %v1320, %v1344
      %v1353 = vadd.f32 %v1321, %v1345
      %v1354 = vadd.f32 %v1322, %v1346
      %v1355 = vlaneseq
      %v1356 = vshrl.u32 %v1355, 7
      %v1357 = vsub.s32 3, %v1356
      %v1358 = vrot.slane %v1253, %v1357
      %v1359 = vlaneseq
      %v1360 = vshrl.u32 %v1359, 7
      %v1361 = vsub.s32 3, %v1360
      %v1362 = vrot.slane %v1263, %v1361
      %v1363 = vlaneseq
      %v1364 = vshrl.u32 %v1363, 7
      %v1365 = vsub.s32 3, %v1364
      %v1366 = vrot.slane %v1258, %v1365
      %v1367 = vlaneseq
      %v1368 = vshrl.u32 %v1367, 7
      %v1369 = vsub.s32 3, %v1368
      %v1370 = vrot.slane %v1264, %v1369
      %v1371 = vmul.f32 %v1358, %v764
      %v1372 = vmul.f32 %v1358, %v769
      %v1373 = vmul.f32 %v1362, %v764
      %v1374 = vmul.f32 %v1362, %v769
      %v1375 = vmul.f32 %v1366, %v764
      %v1376 = vmul.f32 %v1366, %v769
      %v1377 = vmul.f32 %v1370, %v764
      %v1378 = vmul.f32 %v1370, %v769
      %v1379 = vadd.f32 %v1347, %v1371
      %v1380 = vadd.f32 %v1348, %v1372
      %v1381 = vadd.f32 %v1349, %v1373
      %v1382 = vadd.f32 %v1350, %v1374
      %v1383 = vadd.f32 %v1351, %v1375
      %v1384 = vadd.f32 %v1352, %v1376
      %v1385 = vadd.f32 %v1353, %v1377
      %v1386 = vadd.f32 %v1354, %v1378
      %v1387 = vld [vmem:[%s5] sm:$0xff]
      %v1388 = vld [vmem:[%s5 + $0x8] sm:$0xff]
      %v1389 = vld [vmem:[%s5 + $0x10] sm:$0xff]
      %v1390 = vld [vmem:[%s5 + $0x18] sm:$0xff]
      %v1391 = vld [vmem:[%s6] sm:$0x1]
      %v1393 = vlaneseq
      %v1394 = vshrl.u32 %v1393, 7
      %v1395 = vsub.s32 0, %v1394
      %v1396 = vrot.slane %v1391, %v1395
      %v1399 = vsel %vm505, %v1379, 0
      %v1402 = vsel %vm505, %v1380, 0
      %v1405 = vsel %vm505, %v1381, 0
      %v1408 = vsel %vm505, %v1382, 0
      %v1411 = vsel %vm505, %v1383, 0
      %v1414 = vsel %vm505, %v1384, 0
      %v1417 = vsel %vm505, %v1385, 0
      %v1420 = vsel %vm505, %v1386, 0
      %1422 = vmatprep.subr.mxu0 0.0
      %1423 = vmatpush1.msra.mxu0 0.0
      %1424 = vmatprep.subr.mxu0 0.0
      %1425 = vmatpush1.msra.mxu0 0.0
      %1426 = vmatprep.subr.mxu0 0.0
      %1427 = vmatpush1.msra.mxu0 0.0
      %1428 = vmatprep.subr.mxu0 0.0
      %1429 = vmatpush1.msra.mxu0 0.0
      %1430 = vmatprep.subr.mxu0 0.0
      %1431 = vmatpush1.msra.mxu0 0.0
      %1432 = vmatprep.subr.mxu0 0.0
      %1433 = vmatpush1.msra.mxu0 0.0
      %1434 = vmatprep.subr.mxu0 0.0
      %1435 = vmatpush1.msra.mxu0 0.0
      %1436 = vmatprep.subr.mxu0 0.0
      %1437 = vmatpush1.msra.mxu0 0.0
      %1438 = vmatprep.subr.mxu0 0.0
      %1439 = vmatpush1.msra.mxu0 0.0
      %1440 = vmatprep.subr.mxu0 0.0
      %1441 = vmatpush1.msra.mxu0 0.0
      %1442 = vmatprep.subr.mxu0 0.0
      %1443 = vmatpush1.msra.mxu0 0.0
      %1444 = vmatprep.subr.mxu0 0.0
      %1445 = vmatpush1.msra.mxu0 0.0
      %1446 = vmatprep.subr.mxu0 0.0
      %1447 = vmatpush1.msra.mxu0 %v1390
      %1448 = vmatprep.subr.mxu0 0.0
      %1449 = vmatpush1.msra.mxu0 %v1389
      %1450 = vmatprep.subr.mxu0 0.0
      %1451 = vmatpush1.msra.mxu0 %v1388
      %1452 = vmatprep.subr.mxu0 0.0
      %1453 = vmatpush1.msra.mxu0 %v1387
      %1454 = vmatprep.subr.mxu0 0.0
      %1455 = vmatpush2.msra.mxu0 0.0
      %1456 = vmatprep.subr.mxu0 0.0
      %1457 = vmatpush2.msra.mxu0 0.0
      %1458 = vmatprep.subr.mxu0 0.0
      %1459 = vmatpush2.msra.mxu0 0.0
      %1460 = vmatprep.subr.mxu0 0.0
      %1461 = vmatpush2.msra.mxu0 0.0
      %1462 = vmatprep.subr.mxu0 0.0
      %1463 = vmatpush2.msra.mxu0 0.0
      %1464 = vmatprep.subr.mxu0 0.0
      %1465 = vmatpush2.msra.mxu0 0.0
      %1466 = vmatprep.subr.mxu0 0.0
      %1467 = vmatpush2.msra.mxu0 0.0
      %1468 = vmatprep.subr.mxu0 0.0
      %1469 = vmatpush2.msra.mxu0 0.0
      %1470 = vmatprep.subr.mxu0 0.0
      %1471 = vmatpush2.msra.mxu0 0.0
      %1472 = vmatprep.subr.mxu0 0.0
      %1473 = vmatpush2.msra.mxu0 0.0
      %1474 = vmatprep.subr.mxu0 0.0
      %1475 = vmatpush2.msra.mxu0 0.0
      %1476 = vmatprep.subr.mxu0 0.0
      %1477 = vmatpush2.msra.mxu0 0.0
      %1478 = vmatprep.subr.mxu0 0.0
      %1479 = vmatpush2.msra.mxu0 0.0
      %1480 = vmatprep.subr.mxu0 0.0
      %1481 = vmatpush2.msra.mxu0 0.0
      %1482 = vmatprep.subr.mxu0 0.0
      %1483 = vmatpush2.msra.mxu0 0.0
      %1484 = vmatprep.subr.mxu0 0.0
      %1485 = vmatpush2.msra.mxu0 0.0
      %1486 = vmatprep.mubr.f32.mxu0 0.0
      %1487 = vmatmul.mubr.f32.gmra.mxu0 %v1399
      %v1488 = vpop.f32.mrf.mxu0
      %v1489 = vadd.f32 %v1396, %v1488
      %v1490 = vpop.f32.mrf.mxu0
      %1491 = vmatprep.mubr.f32.mxu0 0.0
      %1492 = vmatmul.mubr.f32.gmra.mxu0 %v1402
      %v1493 = vpop.f32.mrf.mxu0
      %v1494 = vadd.f32 %v1396, %v1493
      %v1495 = vpop.f32.mrf.mxu0
      %1496 = vmatprep.mubr.f32.mxu0 0.0
      %1497 = vmatmul.mubr.f32.gmra.mxu0 %v1405
      %v1498 = vpop.f32.mrf.mxu0
      %v1499 = vadd.f32 %v1396, %v1498
      %v1500 = vpop.f32.mrf.mxu0
      %1501 = vmatprep.mubr.f32.mxu0 0.0
      %1502 = vmatmul.mubr.f32.gmra.mxu0 %v1408
      %v1503 = vpop.f32.mrf.mxu0
      %v1504 = vadd.f32 %v1396, %v1503
      %v1505 = vpop.f32.mrf.mxu0
      %1506 = vmatprep.mubr.f32.mxu0 0.0
      %1507 = vmatmul.mubr.f32.gmra.mxu0 %v1411
      %v1508 = vpop.f32.mrf.mxu0
      %v1509 = vadd.f32 %v1396, %v1508
      %v1510 = vpop.f32.mrf.mxu0
      %1511 = vmatprep.mubr.f32.mxu0 0.0
      %1512 = vmatmul.mubr.f32.gmra.mxu0 %v1414
      %v1513 = vpop.f32.mrf.mxu0
      %v1514 = vadd.f32 %v1396, %v1513
      %v1515 = vpop.f32.mrf.mxu0
      %1516 = vmatprep.mubr.f32.mxu0 0.0
      %1517 = vmatmul.mubr.f32.gmra.mxu0 %v1417
      %v1518 = vpop.f32.mrf.mxu0
      %v1519 = vadd.f32 %v1396, %v1518
      %v1520 = vpop.f32.mrf.mxu0
      %1521 = vmatprep.mubr.f32.mxu0 0.0
      %1522 = vmatmul.mubr.f32.gmra.mxu0 %v1420
      %v1523 = vpop.f32.mrf.mxu0
      %v1524 = vadd.f32 %v1396, %v1523
      %v1525 = vpop.f32.mrf.mxu0
      %1526 = vdwg.mxu0
      %v1527 = vadd.f32 %v495, %v1489
      %v1528 = vadd.f32 %v496, %v1494
      %v1529 = vadd.f32 %v497, %v1499
      %v1530 = vadd.f32 %v498, %v1504
      %v1531 = vadd.f32 %v499, %v1509
      %v1532 = vadd.f32 %v500, %v1514
      %v1533 = vadd.f32 %v501, %v1519
      %v1534 = vadd.f32 %v502, %v1524
      %1535 = vst.msk [vmem:[%s494] sm:$0xff] %vm505, %v1527
      %1536 = vst.msk [vmem:[%s494 + $0x8] sm:$0xff] %vm505, %v1528
      %1537 = vst.msk [vmem:[%s494 + $0x10] sm:$0xff] %vm505, %v1529
      %1538 = vst.msk [vmem:[%s494 + $0x18] sm:$0xff] %vm505, %v1530
      %1539 = vst.msk [vmem:[%s494 + $0x20] sm:$0xff] %vm505, %v1531
      %1540 = vst.msk [vmem:[%s494 + $0x28] sm:$0xff] %vm505, %v1532
      %1541 = vst.msk [vmem:[%s494 + $0x30] sm:$0xff] %vm505, %v1533
      %1542 = vst.msk [vmem:[%s494 + $0x38] sm:$0xff] %vm505, %v1534
      %v1543 = vld [vmem:[%s9] sm:$0x1]
      %v1544 = vld [vmem:[%s10] sm:$0x1]
      %v1545 = vld [vmem:[%s12] sm:$0x1]
      %v1546 = vld [vmem:[%s14] sm:$0x1]
      %v1547 = vld [vmem:[%s494] sm:$0xff]
      %v1548 = vld [vmem:[%s494 + $0x8] sm:$0xff]
      %v1549 = vld [vmem:[%s494 + $0x10] sm:$0xff]
      %v1550 = vld [vmem:[%s494 + $0x18] sm:$0xff]
      %v1551 = vld [vmem:[%s494 + $0x20] sm:$0xff]
      %v1552 = vld [vmem:[%s494 + $0x28] sm:$0xff]
      %v1553 = vld [vmem:[%s494 + $0x30] sm:$0xff]
      %v1554 = vld [vmem:[%s494 + $0x38] sm:$0xff]
      %v1555 = vsel %vm505, %v1547, 0.0
      %1556 = vadd.xlane.f32.xlu0 %v1555
      %v1557 = vpop.xlane.xlu0 %1556
      %v1558 = vsel %vm505, %v1548, 0.0
      %1559 = vadd.xlane.f32.xlu0 %v1558
      %v1560 = vpop.xlane.xlu0 %1559
      %v1561 = vsel %vm505, %v1549, 0.0
      %1562 = vadd.xlane.f32.xlu0 %v1561
      %v1563 = vpop.xlane.xlu0 %1562
      %v1564 = vsel %vm505, %v1550, 0.0
      %1565 = vadd.xlane.f32.xlu0 %v1564
      %v1566 = vpop.xlane.xlu0 %1565
      %v1567 = vsel %vm505, %v1551, 0.0
      %1568 = vadd.xlane.f32.xlu0 %v1567
      %v1569 = vpop.xlane.xlu0 %1568
      %v1570 = vsel %vm505, %v1552, 0.0
      %1571 = vadd.xlane.f32.xlu0 %v1570
      %v1572 = vpop.xlane.xlu0 %1571
      %v1573 = vsel %vm505, %v1553, 0.0
      %1574 = vadd.xlane.f32.xlu0 %v1573
      %v1575 = vpop.xlane.xlu0 %1574
      %v1576 = vsel %vm505, %v1554, 0.0
      %1577 = vadd.xlane.f32.xlu0 %v1576
      %v1578 = vpop.xlane.xlu0 %1577
      %v1579 = vmul.f32 %v1557, %v530
      %v1580 = vmul.f32 %v1560, %v530
      %v1581 = vmul.f32 %v1563, %v530
      %v1582 = vmul.f32 %v1566, %v530
      %v1583 = vmul.f32 %v1569, %v530
      %v1584 = vmul.f32 %v1572, %v530
      %v1585 = vmul.f32 %v1575, %v530
      %v1586 = vmul.f32 %v1578, %v530
      %v1587 = vsub.f32 %v1547, %v1579
      %v1588 = vsub.f32 %v1548, %v1580
      %v1589 = vsub.f32 %v1549, %v1581
      %v1590 = vsub.f32 %v1550, %v1582
      %v1591 = vsub.f32 %v1551, %v1583
      %v1592 = vsub.f32 %v1552, %v1584
      %v1593 = vsub.f32 %v1553, %v1585
      %v1594 = vsub.f32 %v1554, %v1586
      %v1595 = vmul.f32 %v1587, %v1587
      %v1596 = vmul.f32 %v1588, %v1588
      %v1597 = vmul.f32 %v1589, %v1589
      %v1598 = vmul.f32 %v1590, %v1590
      %v1599 = vmul.f32 %v1591, %v1591
      %v1600 = vmul.f32 %v1592, %v1592
      %v1601 = vmul.f32 %v1593, %v1593
      %v1602 = vmul.f32 %v1594, %v1594
      %v1603 = vsel %vm505, %v1595, 0.0
      %1604 = vadd.xlane.f32.xlu0 %v1603
      %v1605 = vpop.xlane.xlu0 %1604
      %v1606 = vsel %vm505, %v1596, 0.0
      %1607 = vadd.xlane.f32.xlu0 %v1606
      %v1608 = vpop.xlane.xlu0 %1607
      %v1609 = vsel %vm505, %v1597, 0.0
      %1610 = vadd.xlane.f32.xlu0 %v1609
      %v1611 = vpop.xlane.xlu0 %1610
      %v1612 = vsel %vm505, %v1598, 0.0
      %1613 = vadd.xlane.f32.xlu0 %v1612
      %v1614 = vpop.xlane.xlu0 %1613
      %v1615 = vsel %vm505, %v1599, 0.0
      %1616 = vadd.xlane.f32.xlu0 %v1615
      %v1617 = vpop.xlane.xlu0 %1616
      %v1618 = vsel %vm505, %v1600, 0.0
      %1619 = vadd.xlane.f32.xlu0 %v1618
      %v1620 = vpop.xlane.xlu0 %1619
      %v1621 = vsel %vm505, %v1601, 0.0
      %1622 = vadd.xlane.f32.xlu0 %v1621
      %v1623 = vpop.xlane.xlu0 %1622
      %v1624 = vsel %vm505, %v1602, 0.0
      %1625 = vadd.xlane.f32.xlu0 %v1624
      %v1626 = vpop.xlane.xlu0 %1625
      %v1627 = vmul.f32 %v1605, %v530
      %v1628 = vmul.f32 %v1608, %v530
      %v1629 = vmul.f32 %v1611, %v530
      %v1630 = vmul.f32 %v1614, %v530
      %v1631 = vmul.f32 %v1617, %v530
      %v1632 = vmul.f32 %v1620, %v530
      %v1633 = vmul.f32 %v1623, %v530
      %v1634 = vmul.f32 %v1626, %v530
      %v1635 = vadd.f32 %v1627, 1e-05
      %v1636 = vadd.f32 %v1628, 1e-05
      %v1637 = vadd.f32 %v1629, 1e-05
      %v1638 = vadd.f32 %v1630, 1e-05
      %v1639 = vadd.f32 %v1631, 1e-05
      %v1640 = vadd.f32 %v1632, 1e-05
      %v1641 = vadd.f32 %v1633, 1e-05
      %v1642 = vadd.f32 %v1634, 1e-05
      %v1643 = vrsqrt.pop %v1635
      %v1644 = vrsqrt.pop %v1636
      %v1645 = vrsqrt.pop %v1637
      %v1646 = vrsqrt.pop %v1638
      %v1647 = vrsqrt.pop %v1639
      %v1648 = vrsqrt.pop %v1640
      %v1649 = vrsqrt.pop %v1641
      %v1650 = vrsqrt.pop %v1642
      %v1651 = vmul.f32 %v1587, %v1643
      %v1652 = vmul.f32 %v1588, %v1644
      %v1653 = vmul.f32 %v1589, %v1645
      %v1654 = vmul.f32 %v1590, %v1646
      %v1655 = vmul.f32 %v1591, %v1647
      %v1656 = vmul.f32 %v1592, %v1648
      %v1657 = vmul.f32 %v1593, %v1649
      %v1658 = vmul.f32 %v1594, %v1650
      %v1660 = vlaneseq
      %v1661 = vshrl.u32 %v1660, 7
      %v1662 = vsub.s32 0, %v1661
      %v1663 = vrot.slane %v1543, %v1662
      %v1665 = vmul.f32 %v1651, %v1663
      %v1666 = vmul.f32 %v1652, %v1663
      %v1667 = vmul.f32 %v1653, %v1663
      %v1668 = vmul.f32 %v1654, %v1663
      %v1669 = vmul.f32 %v1655, %v1663
      %v1670 = vmul.f32 %v1656, %v1663
      %v1671 = vmul.f32 %v1657, %v1663
      %v1672 = vmul.f32 %v1658, %v1663
      %v1674 = vlaneseq
      %v1675 = vshrl.u32 %v1674, 7
      %v1676 = vsub.s32 0, %v1675
      %v1677 = vrot.slane %v1544, %v1676
      %v1679 = vadd.f32 %v1665, %v1677
      %v1680 = vadd.f32 %v1666, %v1677
      %v1681 = vadd.f32 %v1667, %v1677
      %v1682 = vadd.f32 %v1668, %v1677
      %v1683 = vadd.f32 %v1669, %v1677
      %v1684 = vadd.f32 %v1670, %v1677
      %v1685 = vadd.f32 %v1671, %v1677
      %v1686 = vadd.f32 %v1672, %v1677
      %v1687 = vld [vmem:[%s11] sm:$0xff]
      %v1688 = vld [vmem:[%s11 + $0x8] sm:$0xff]
      %v1689 = vld [vmem:[%s11 + $0x10] sm:$0xff]
      %v1690 = vld [vmem:[%s11 + $0x18] sm:$0xff]
      %v1692 = vlaneseq
      %v1693 = vshrl.u32 %v1692, 7
      %v1694 = vsub.s32 0, %v1693
      %v1695 = vrot.slane %v1545, %v1694
      %v1698 = vsel %vm505, %v1679, 0
      %v1701 = vsel %vm505, %v1680, 0
      %v1704 = vsel %vm505, %v1681, 0
      %v1707 = vsel %vm505, %v1682, 0
      %v1710 = vsel %vm505, %v1683, 0
      %v1713 = vsel %vm505, %v1684, 0
      %v1716 = vsel %vm505, %v1685, 0
      %v1719 = vsel %vm505, %v1686, 0
      %1721 = vmatprep.subr.mxu0 0.0
      %1722 = vmatpush1.msra.mxu0 0.0
      %1723 = vmatprep.subr.mxu0 0.0
      %1724 = vmatpush1.msra.mxu0 0.0
      %1725 = vmatprep.subr.mxu0 0.0
      %1726 = vmatpush1.msra.mxu0 0.0
      %1727 = vmatprep.subr.mxu0 0.0
      %1728 = vmatpush1.msra.mxu0 0.0
      %1729 = vmatprep.subr.mxu0 0.0
      %1730 = vmatpush1.msra.mxu0 0.0
      %1731 = vmatprep.subr.mxu0 0.0
      %1732 = vmatpush1.msra.mxu0 0.0
      %1733 = vmatprep.subr.mxu0 0.0
      %1734 = vmatpush1.msra.mxu0 0.0
      %1735 = vmatprep.subr.mxu0 0.0
      %1736 = vmatpush1.msra.mxu0 0.0
      %1737 = vmatprep.subr.mxu0 0.0
      %1738 = vmatpush1.msra.mxu0 0.0
      %1739 = vmatprep.subr.mxu0 0.0
      %1740 = vmatpush1.msra.mxu0 0.0
      %1741 = vmatprep.subr.mxu0 0.0
      %1742 = vmatpush1.msra.mxu0 0.0
      %1743 = vmatprep.subr.mxu0 0.0
      %1744 = vmatpush1.msra.mxu0 0.0
      %1745 = vmatprep.subr.mxu0 0.0
      %1746 = vmatpush1.msra.mxu0 %v1690
      %1747 = vmatprep.subr.mxu0 0.0
      %1748 = vmatpush1.msra.mxu0 %v1689
      %1749 = vmatprep.subr.mxu0 0.0
      %1750 = vmatpush1.msra.mxu0 %v1688
      %1751 = vmatprep.subr.mxu0 0.0
      %1752 = vmatpush1.msra.mxu0 %v1687
      %1753 = vmatprep.subr.mxu0 0.0
      %1754 = vmatpush2.msra.mxu0 0.0
      %1755 = vmatprep.subr.mxu0 0.0
      %1756 = vmatpush2.msra.mxu0 0.0
      %1757 = vmatprep.subr.mxu0 0.0
      %1758 = vmatpush2.msra.mxu0 0.0
      %1759 = vmatprep.subr.mxu0 0.0
      %1760 = vmatpush2.msra.mxu0 0.0
      %1761 = vmatprep.subr.mxu0 0.0
      %1762 = vmatpush2.msra.mxu0 0.0
      %1763 = vmatprep.subr.mxu0 0.0
      %1764 = vmatpush2.msra.mxu0 0.0
      %1765 = vmatprep.subr.mxu0 0.0
      %1766 = vmatpush2.msra.mxu0 0.0
      %1767 = vmatprep.subr.mxu0 0.0
      %1768 = vmatpush2.msra.mxu0 0.0
      %1769 = vmatprep.subr.mxu0 0.0
      %1770 = vmatpush2.msra.mxu0 0.0
      %1771 = vmatprep.subr.mxu0 0.0
      %1772 = vmatpush2.msra.mxu0 0.0
      %1773 = vmatprep.subr.mxu0 0.0
      %1774 = vmatpush2.msra.mxu0 0.0
      %1775 = vmatprep.subr.mxu0 0.0
      %1776 = vmatpush2.msra.mxu0 0.0
      %1777 = vmatprep.subr.mxu0 0.0
      %1778 = vmatpush2.msra.mxu0 0.0
      %1779 = vmatprep.subr.mxu0 0.0
      %1780 = vmatpush2.msra.mxu0 0.0
      %1781 = vmatprep.subr.mxu0 0.0
      %1782 = vmatpush2.msra.mxu0 0.0
      %1783 = vmatprep.subr.mxu0 0.0
      %1784 = vmatpush2.msra.mxu0 0.0
      %1785 = vmatprep.mubr.f32.mxu0 0.0
      %1786 = vmatmul.mubr.f32.gmra.mxu0 %v1698
      %v1787 = vpop.f32.mrf.mxu0
      %v1788 = vadd.f32 %v1695, %v1787
      %v1789 = vpop.f32.mrf.mxu0
      %1790 = vmatprep.mubr.f32.mxu0 0.0
      %1791 = vmatmul.mubr.f32.gmra.mxu0 %v1701
      %v1792 = vpop.f32.mrf.mxu0
      %v1793 = vadd.f32 %v1695, %v1792
      %v1794 = vpop.f32.mrf.mxu0
      %1795 = vmatprep.mubr.f32.mxu0 0.0
      %1796 = vmatmul.mubr.f32.gmra.mxu0 %v1704
      %v1797 = vpop.f32.mrf.mxu0
      %v1798 = vadd.f32 %v1695, %v1797
      %v1799 = vpop.f32.mrf.mxu0
      %1800 = vmatprep.mubr.f32.mxu0 0.0
      %1801 = vmatmul.mubr.f32.gmra.mxu0 %v1707
      %v1802 = vpop.f32.mrf.mxu0
      %v1803 = vadd.f32 %v1695, %v1802
      %v1804 = vpop.f32.mrf.mxu0
      %1805 = vmatprep.mubr.f32.mxu0 0.0
      %1806 = vmatmul.mubr.f32.gmra.mxu0 %v1710
      %v1807 = vpop.f32.mrf.mxu0
      %v1808 = vadd.f32 %v1695, %v1807
      %v1809 = vpop.f32.mrf.mxu0
      %1810 = vmatprep.mubr.f32.mxu0 0.0
      %1811 = vmatmul.mubr.f32.gmra.mxu0 %v1713
      %v1812 = vpop.f32.mrf.mxu0
      %v1813 = vadd.f32 %v1695, %v1812
      %v1814 = vpop.f32.mrf.mxu0
      %1815 = vmatprep.mubr.f32.mxu0 0.0
      %1816 = vmatmul.mubr.f32.gmra.mxu0 %v1716
      %v1817 = vpop.f32.mrf.mxu0
      %v1818 = vadd.f32 %v1695, %v1817
      %v1819 = vpop.f32.mrf.mxu0
      %1820 = vmatprep.mubr.f32.mxu0 0.0
      %1821 = vmatmul.mubr.f32.gmra.mxu0 %v1719
      %v1822 = vpop.f32.mrf.mxu0
      %v1823 = vadd.f32 %v1695, %v1822
      %v1824 = vpop.f32.mrf.mxu0
      %1825 = vdwg.mxu0
      %v1826 = vmul.f32 %v1788, 0.5
      %v1827 = vmul.f32 %v1793, 0.5
      %v1828 = vmul.f32 %v1798, 0.5
      %v1829 = vmul.f32 %v1803, 0.5
      %v1830 = vmul.f32 %v1808, 0.5
      %v1831 = vmul.f32 %v1813, 0.5
      %v1832 = vmul.f32 %v1818, 0.5
      %v1833 = vmul.f32 %v1823, 0.5
      %v1834 = vmul.f32 %v1788, 0.70710677
      %v1835 = vmul.f32 %v1793, 0.70710677
      %v1836 = vmul.f32 %v1798, 0.70710677
      %v1837 = vmul.f32 %v1803, 0.70710677
      %v1838 = vmul.f32 %v1808, 0.70710677
      %v1839 = vmul.f32 %v1813, 0.70710677
      %v1840 = vmul.f32 %v1818, 0.70710677
      %v1841 = vmul.f32 %v1823, 0.70710677
      %vm1842 = vcmp.ge.f32.partialorder %v1834, 0.0
      %vm1843 = vcmp.ge.f32.partialorder %v1835, 0.0
      %vm1844 = vcmp.ge.f32.partialorder %v1836, 0.0
      %vm1845 = vcmp.ge.f32.partialorder %v1837, 0.0
      %vm1846 = vcmp.ge.f32.partialorder %v1838, 0.0
      %vm1847 = vcmp.ge.f32.partialorder %v1839, 0.0
      %vm1848 = vcmp.ge.f32.partialorder %v1840, 0.0
      %vm1849 = vcmp.ge.f32.partialorder %v1841, 0.0
      %v1850 = vsel %vm1842, 1.0, -1.0
      %v1851 = vsel %vm1843, 1.0, -1.0
      %v1852 = vsel %vm1844, 1.0, -1.0
      %v1853 = vsel %vm1845, 1.0, -1.0
      %v1854 = vsel %vm1846, 1.0, -1.0
      %v1855 = vsel %vm1847, 1.0, -1.0
      %v1856 = vsel %vm1848, 1.0, -1.0
      %v1857 = vsel %vm1849, 1.0, -1.0
      %v1858 = vand.u32 2147483647, %v1834
      %v1859 = vand.u32 2147483647, %v1835
      %v1860 = vand.u32 2147483647, %v1836
      %v1861 = vand.u32 2147483647, %v1837
      %v1862 = vand.u32 2147483647, %v1838
      %v1863 = vand.u32 2147483647, %v1839
      %v1864 = vand.u32 2147483647, %v1840
      %v1865 = vand.u32 2147483647, %v1841
      %v1866 = vmul.f32 %v1858, 0.3275911
      %v1867 = vmul.f32 %v1859, 0.3275911
      %v1868 = vmul.f32 %v1860, 0.3275911
      %v1869 = vmul.f32 %v1861, 0.3275911
      %v1870 = vmul.f32 %v1862, 0.3275911
      %v1871 = vmul.f32 %v1863, 0.3275911
      %v1872 = vmul.f32 %v1864, 0.3275911
      %v1873 = vmul.f32 %v1865, 0.3275911
      %v1874 = vadd.f32 %v1866, 1.0
      %v1875 = vadd.f32 %v1867, 1.0
      %v1876 = vadd.f32 %v1868, 1.0
      %v1877 = vadd.f32 %v1869, 1.0
      %v1878 = vadd.f32 %v1870, 1.0
      %v1879 = vadd.f32 %v1871, 1.0
      %v1880 = vadd.f32 %v1872, 1.0
      %v1881 = vadd.f32 %v1873, 1.0
      %v1882 = vrcp.pop %v1874
      %v1883 = vmul.f32 1.0, %v1882
      %v1884 = vrcp.pop %v1875
      %v1885 = vmul.f32 1.0, %v1884
      %v1886 = vrcp.pop %v1876
      %v1887 = vmul.f32 1.0, %v1886
      %v1888 = vrcp.pop %v1877
      %v1889 = vmul.f32 1.0, %v1888
      %v1890 = vrcp.pop %v1878
      %v1891 = vmul.f32 1.0, %v1890
      %v1892 = vrcp.pop %v1879
      %v1893 = vmul.f32 1.0, %v1892
      %v1894 = vrcp.pop %v1880
      %v1895 = vmul.f32 1.0, %v1894
      %v1896 = vrcp.pop %v1881
      %v1897 = vmul.f32 1.0, %v1896
      %v1898 = vmul.f32 %v1883, 1.0614054
      %v1899 = vmul.f32 %v1885, 1.0614054
      %v1900 = vmul.f32 %v1887, 1.0614054
      %v1901 = vmul.f32 %v1889, 1.0614054
      %v1902 = vmul.f32 %v1891, 1.0614054
      %v1903 = vmul.f32 %v1893, 1.0614054
      %v1904 = vmul.f32 %v1895, 1.0614054
      %v1905 = vmul.f32 %v1897, 1.0614054
      %v1906 = vadd.f32 %v1898, -1.4531521
      %v1907 = vadd.f32 %v1899, -1.4531521
      %v1908 = vadd.f32 %v1900, -1.4531521
      %v1909 = vadd.f32 %v1901, -1.4531521
      %v1910 = vadd.f32 %v1902, -1.4531521
      %v1911 = vadd.f32 %v1903, -1.4531521
      %v1912 = vadd.f32 %v1904, -1.4531521
      %v1913 = vadd.f32 %v1905, -1.4531521
      %v1914 = vmul.f32 %v1906, %v1883
      %v1915 = vmul.f32 %v1907, %v1885
      %v1916 = vmul.f32 %v1908, %v1887
      %v1917 = vmul.f32 %v1909, %v1889
      %v1918 = vmul.f32 %v1910, %v1891
      %v1919 = vmul.f32 %v1911, %v1893
      %v1920 = vmul.f32 %v1912, %v1895
      %v1921 = vmul.f32 %v1913, %v1897
      %v1922 = vadd.f32 %v1914, 1.4214138
      %v1923 = vadd.f32 %v1915, 1.4214138
      %v1924 = vadd.f32 %v1916, 1.4214138
      %v1925 = vadd.f32 %v1917, 1.4214138
      %v1926 = vadd.f32 %v1918, 1.4214138
      %v1927 = vadd.f32 %v1919, 1.4214138
      %v1928 = vadd.f32 %v1920, 1.4214138
      %v1929 = vadd.f32 %v1921, 1.4214138
      %v1930 = vmul.f32 %v1922, %v1883
      %v1931 = vmul.f32 %v1923, %v1885
      %v1932 = vmul.f32 %v1924, %v1887
      %v1933 = vmul.f32 %v1925, %v1889
      %v1934 = vmul.f32 %v1926, %v1891
      %v1935 = vmul.f32 %v1927, %v1893
      %v1936 = vmul.f32 %v1928, %v1895
      %v1937 = vmul.f32 %v1929, %v1897
      %v1938 = vadd.f32 %v1930, -0.28449672
      %v1939 = vadd.f32 %v1931, -0.28449672
      %v1940 = vadd.f32 %v1932, -0.28449672
      %v1941 = vadd.f32 %v1933, -0.28449672
      %v1942 = vadd.f32 %v1934, -0.28449672
      %v1943 = vadd.f32 %v1935, -0.28449672
      %v1944 = vadd.f32 %v1936, -0.28449672
      %v1945 = vadd.f32 %v1937, -0.28449672
      %v1946 = vmul.f32 %v1938, %v1883
      %v1947 = vmul.f32 %v1939, %v1885
      %v1948 = vmul.f32 %v1940, %v1887
      %v1949 = vmul.f32 %v1941, %v1889
      %v1950 = vmul.f32 %v1942, %v1891
      %v1951 = vmul.f32 %v1943, %v1893
      %v1952 = vmul.f32 %v1944, %v1895
      %v1953 = vmul.f32 %v1945, %v1897
      %v1954 = vadd.f32 %v1946, 0.2548296
      %v1955 = vadd.f32 %v1947, 0.2548296
      %v1956 = vadd.f32 %v1948, 0.2548296
      %v1957 = vadd.f32 %v1949, 0.2548296
      %v1958 = vadd.f32 %v1950, 0.2548296
      %v1959 = vadd.f32 %v1951, 0.2548296
      %v1960 = vadd.f32 %v1952, 0.2548296
      %v1961 = vadd.f32 %v1953, 0.2548296
      %v1962 = vmul.f32 %v1954, %v1883
      %v1963 = vmul.f32 %v1955, %v1885
      %v1964 = vmul.f32 %v1956, %v1887
      %v1965 = vmul.f32 %v1957, %v1889
      %v1966 = vmul.f32 %v1958, %v1891
      %v1967 = vmul.f32 %v1959, %v1893
      %v1968 = vmul.f32 %v1960, %v1895
      %v1969 = vmul.f32 %v1961, %v1897
      %v1970 = vsub.f32 0.0, %v1858
      %v1971 = vsub.f32 0.0, %v1859
      %v1972 = vsub.f32 0.0, %v1860
      %v1973 = vsub.f32 0.0, %v1861
      %v1974 = vsub.f32 0.0, %v1862
      %v1975 = vsub.f32 0.0, %v1863
      %v1976 = vsub.f32 0.0, %v1864
      %v1977 = vsub.f32 0.0, %v1865
      %v1978 = vmul.f32 %v1970, %v1858
      %v1979 = vmul.f32 %v1971, %v1859
      %v1980 = vmul.f32 %v1972, %v1860
      %v1981 = vmul.f32 %v1973, %v1861
      %v1982 = vmul.f32 %v1974, %v1862
      %v1983 = vmul.f32 %v1975, %v1863
      %v1984 = vmul.f32 %v1976, %v1864
      %v1985 = vmul.f32 %v1977, %v1865
      %v1986 = vmul.f32 %v1978, 1.442695
      %v1987 = vpow.pop %v1986
      %v1988 = vmul.f32 %v1979, 1.442695
      %v1989 = vpow.pop %v1988
      %v1990 = vmul.f32 %v1980, 1.442695
      %v1991 = vpow.pop %v1990
      %v1992 = vmul.f32 %v1981, 1.442695
      %v1993 = vpow.pop %v1992
      %v1994 = vmul.f32 %v1982, 1.442695
      %v1995 = vpow.pop %v1994
      %v1996 = vmul.f32 %v1983, 1.442695
      %v1997 = vpow.pop %v1996
      %v1998 = vmul.f32 %v1984, 1.442695
      %v1999 = vpow.pop %v1998
      %v2000 = vmul.f32 %v1985, 1.442695
      %v2001 = vpow.pop %v2000
      %v2002 = vmul.f32 %v1962, %v1987
      %v2003 = vmul.f32 %v1963, %v1989
      %v2004 = vmul.f32 %v1964, %v1991
      %v2005 = vmul.f32 %v1965, %v1993
      %v2006 = vmul.f32 %v1966, %v1995
      %v2007 = vmul.f32 %v1967, %v1997
      %v2008 = vmul.f32 %v1968, %v1999
      %v2009 = vmul.f32 %v1969, %v2001
      %v2010 = vsub.f32 1.0, %v2002
      %v2011 = vsub.f32 1.0, %v2003
      %v2012 = vsub.f32 1.0, %v2004
      %v2013 = vsub.f32 1.0, %v2005
      %v2014 = vsub.f32 1.0, %v2006
      %v2015 = vsub.f32 1.0, %v2007
      %v2016 = vsub.f32 1.0, %v2008
      %v2017 = vsub.f32 1.0, %v2009
      %v2018 = vmul.f32 %v1850, %v2010
      %v2019 = vmul.f32 %v1851, %v2011
      %v2020 = vmul.f32 %v1852, %v2012
      %v2021 = vmul.f32 %v1853, %v2013
      %v2022 = vmul.f32 %v1854, %v2014
      %v2023 = vmul.f32 %v1855, %v2015
      %v2024 = vmul.f32 %v1856, %v2016
      %v2025 = vmul.f32 %v1857, %v2017
      %v2026 = vadd.f32 %v2018, 1.0
      %v2027 = vadd.f32 %v2019, 1.0
      %v2028 = vadd.f32 %v2020, 1.0
      %v2029 = vadd.f32 %v2021, 1.0
      %v2030 = vadd.f32 %v2022, 1.0
      %v2031 = vadd.f32 %v2023, 1.0
      %v2032 = vadd.f32 %v2024, 1.0
      %v2033 = vadd.f32 %v2025, 1.0
      %v2034 = vmul.f32 %v1826, %v2026
      %v2035 = vmul.f32 %v1827, %v2027
      %v2036 = vmul.f32 %v1828, %v2028
      %v2037 = vmul.f32 %v1829, %v2029
      %v2038 = vmul.f32 %v1830, %v2030
      %v2039 = vmul.f32 %v1831, %v2031
      %v2040 = vmul.f32 %v1832, %v2032
      %v2041 = vmul.f32 %v1833, %v2033
      %v2042 = vld [vmem:[%s13] sm:$0xff]
      %v2043 = vld [vmem:[%s13 + $0x8] sm:$0xff]
      %v2044 = vld [vmem:[%s13 + $0x10] sm:$0xff]
      %v2045 = vld [vmem:[%s13 + $0x18] sm:$0xff]
      %v2046 = vld [vmem:[%s13 + $0x20] sm:$0xff]
      %v2047 = vld [vmem:[%s13 + $0x28] sm:$0xff]
      %v2048 = vld [vmem:[%s13 + $0x30] sm:$0xff]
      %v2049 = vld [vmem:[%s13 + $0x38] sm:$0xff]
      %v2050 = vld [vmem:[%s13 + $0x40] sm:$0xff]
      %v2051 = vld [vmem:[%s13 + $0x48] sm:$0xff]
      %v2052 = vld [vmem:[%s13 + $0x50] sm:$0xff]
      %v2053 = vld [vmem:[%s13 + $0x58] sm:$0xff]
      %v2054 = vld [vmem:[%s13 + $0x60] sm:$0xff]
      %v2055 = vld [vmem:[%s13 + $0x68] sm:$0xff]
      %v2056 = vld [vmem:[%s13 + $0x70] sm:$0xff]
      %v2057 = vld [vmem:[%s13 + $0x78] sm:$0xff]
      %v2059 = vlaneseq
      %v2060 = vshrl.u32 %v2059, 7
      %v2061 = vsub.s32 0, %v2060
      %v2062 = vrot.slane %v1546, %v2061
      %2064 = vmatprep.subr.mxu0 0.0
      %2065 = vmatpush1.msra.mxu0 %v2057
      %2066 = vmatprep.subr.mxu0 0.0
      %2067 = vmatpush1.msra.mxu0 %v2056
      %2068 = vmatprep.subr.mxu0 0.0
      %2069 = vmatpush1.msra.mxu0 %v2055
      %2070 = vmatprep.subr.mxu0 0.0
      %2071 = vmatpush1.msra.mxu0 %v2054
      %2072 = vmatprep.subr.mxu0 0.0
      %2073 = vmatpush1.msra.mxu0 %v2053
      %2074 = vmatprep.subr.mxu0 0.0
      %2075 = vmatpush1.msra.mxu0 %v2052
      %2076 = vmatprep.subr.mxu0 0.0
      %2077 = vmatpush1.msra.mxu0 %v2051
      %2078 = vmatprep.subr.mxu0 0.0
      %2079 = vmatpush1.msra.mxu0 %v2050
      %2080 = vmatprep.subr.mxu0 0.0
      %2081 = vmatpush1.msra.mxu0 %v2049
      %2082 = vmatprep.subr.mxu0 0.0
      %2083 = vmatpush1.msra.mxu0 %v2048
      %2084 = vmatprep.subr.mxu0 0.0
      %2085 = vmatpush1.msra.mxu0 %v2047
      %2086 = vmatprep.subr.mxu0 0.0
      %2087 = vmatpush1.msra.mxu0 %v2046
      %2088 = vmatprep.subr.mxu0 0.0
      %2089 = vmatpush1.msra.mxu0 %v2045
      %2090 = vmatprep.subr.mxu0 0.0
      %2091 = vmatpush1.msra.mxu0 %v2044
      %2092 = vmatprep.subr.mxu0 0.0
      %2093 = vmatpush1.msra.mxu0 %v2043
      %2094 = vmatprep.subr.mxu0 0.0
      %2095 = vmatpush1.msra.mxu0 %v2042
      %2096 = vmatprep.subr.mxu0 0.0
      %2097 = vmatpush2.msra.mxu0 0.0
      %2098 = vmatprep.subr.mxu0 0.0
      %2099 = vmatpush2.msra.mxu0 0.0
      %2100 = vmatprep.subr.mxu0 0.0
      %2101 = vmatpush2.msra.mxu0 0.0
      %2102 = vmatprep.subr.mxu0 0.0
      %2103 = vmatpush2.msra.mxu0 0.0
      %2104 = vmatprep.subr.mxu0 0.0
      %2105 = vmatpush2.msra.mxu0 0.0
      %2106 = vmatprep.subr.mxu0 0.0
      %2107 = vmatpush2.msra.mxu0 0.0
      %2108 = vmatprep.subr.mxu0 0.0
      %2109 = vmatpush2.msra.mxu0 0.0
      %2110 = vmatprep.subr.mxu0 0.0
      %2111 = vmatpush2.msra.mxu0 0.0
      %2112 = vmatprep.subr.mxu0 0.0
      %2113 = vmatpush2.msra.mxu0 0.0
      %2114 = vmatprep.subr.mxu0 0.0
      %2115 = vmatpush2.msra.mxu0 0.0
      %2116 = vmatprep.subr.mxu0 0.0
      %2117 = vmatpush2.msra.mxu0 0.0
      %2118 = vmatprep.subr.mxu0 0.0
      %2119 = vmatpush2.msra.mxu0 0.0
      %2120 = vmatprep.subr.mxu0 0.0
      %2121 = vmatpush2.msra.mxu0 0.0
      %2122 = vmatprep.subr.mxu0 0.0
      %2123 = vmatpush2.msra.mxu0 0.0
      %2124 = vmatprep.subr.mxu0 0.0
      %2125 = vmatpush2.msra.mxu0 0.0
      %2126 = vmatprep.subr.mxu0 0.0
      %2127 = vmatpush2.msra.mxu0 0.0
      %2128 = vmatprep.mubr.f32.mxu0 0.0
      %2129 = vmatmul.mubr.f32.gmra.mxu0 %v2034
      %v2130 = vpop.f32.mrf.mxu0
      %v2131 = vadd.f32 %v2062, %v2130
      %v2132 = vpop.f32.mrf.mxu0
      %2133 = vmatprep.mubr.f32.mxu0 0.0
      %2134 = vmatmul.mubr.f32.gmra.mxu0 %v2035
      %v2135 = vpop.f32.mrf.mxu0
      %v2136 = vadd.f32 %v2062, %v2135
      %v2137 = vpop.f32.mrf.mxu0
      %2138 = vmatprep.mubr.f32.mxu0 0.0
      %2139 = vmatmul.mubr.f32.gmra.mxu0 %v2036
      %v2140 = vpop.f32.mrf.mxu0
      %v2141 = vadd.f32 %v2062, %v2140
      %v2142 = vpop.f32.mrf.mxu0
      %2143 = vmatprep.mubr.f32.mxu0 0.0
      %2144 = vmatmul.mubr.f32.gmra.mxu0 %v2037
      %v2145 = vpop.f32.mrf.mxu0
      %v2146 = vadd.f32 %v2062, %v2145
      %v2147 = vpop.f32.mrf.mxu0
      %2148 = vmatprep.mubr.f32.mxu0 0.0
      %2149 = vmatmul.mubr.f32.gmra.mxu0 %v2038
      %v2150 = vpop.f32.mrf.mxu0
      %v2151 = vadd.f32 %v2062, %v2150
      %v2152 = vpop.f32.mrf.mxu0
      %2153 = vmatprep.mubr.f32.mxu0 0.0
      %2154 = vmatmul.mubr.f32.gmra.mxu0 %v2039
      %v2155 = vpop.f32.mrf.mxu0
      %v2156 = vadd.f32 %v2062, %v2155
      %v2157 = vpop.f32.mrf.mxu0
      %2158 = vmatprep.mubr.f32.mxu0 0.0
      %2159 = vmatmul.mubr.f32.gmra.mxu0 %v2040
      %v2160 = vpop.f32.mrf.mxu0
      %v2161 = vadd.f32 %v2062, %v2160
      %v2162 = vpop.f32.mrf.mxu0
      %2163 = vmatprep.mubr.f32.mxu0 0.0
      %2164 = vmatmul.mubr.f32.gmra.mxu0 %v2041
      %v2165 = vpop.f32.mrf.mxu0
      %v2166 = vadd.f32 %v2062, %v2165
      %v2167 = vpop.f32.mrf.mxu0
      %2168 = vdwg.mxu0
      %v2169 = vadd.f32 %v1547, %v2131
      %v2170 = vadd.f32 %v1548, %v2136
      %v2171 = vadd.f32 %v1549, %v2141
      %v2172 = vadd.f32 %v1550, %v2146
      %v2173 = vadd.f32 %v1551, %v2151
      %v2174 = vadd.f32 %v1552, %v2156
      %v2175 = vadd.f32 %v1553, %v2161
      %v2176 = vadd.f32 %v1554, %v2166
      %2177 = vst.msk [vmem:[%s494] sm:$0xff] %vm505, %v2169
      %2178 = vst.msk [vmem:[%s494 + $0x8] sm:$0xff] %vm505, %v2170
      %2179 = vst.msk [vmem:[%s494 + $0x10] sm:$0xff] %vm505, %v2171
      %2180 = vst.msk [vmem:[%s494 + $0x18] sm:$0xff] %vm505, %v2172
      %2181 = vst.msk [vmem:[%s494 + $0x20] sm:$0xff] %vm505, %v2173
      %2182 = vst.msk [vmem:[%s494 + $0x28] sm:$0xff] %vm505, %v2174
      %2183 = vst.msk [vmem:[%s494 + $0x30] sm:$0xff] %vm505, %v2175
      %2184 = vst.msk [vmem:[%s494 + $0x38] sm:$0xff] %vm505, %v2176
      %p2185 = scmp.lt.s32.totalorder %s26, 1
      %s2186 = scalar_select %p2185, %s26, 1
      %s2187 = smul.addr %s2186, 8
      %s2188 = smul.addr %s2187, 8
      %s2189 = scalar_lea.vmem %s15, %s2188
      // Predicated region
      $region81: #{tpu_custom_call.1} parent=79 // pred_check
        %p2190 = pneg %p364
      $region82: #{tpu_custom_call.1} parent=79 // pred_check_branch
        %2192 = sbr.rel (%p2190) target = $region84
      $region83: #{tpu_custom_call.1} parent=79 // pred_region
        _
      $region84: #{tpu_custom_call.1} parent=79 // pred_fallthru
        _
    $region80: #{tpu_custom_call.1} parent=5 // pred_fallthru
      _
    %p2193 = scmp.le.s32.totalorder 2, %s21
    // Predicated region
    $region85: #{tpu_custom_call.1} parent=5 // pred_check
      %p2194 = pneg %p2193
    $region86: #{tpu_custom_call.1} parent=5 // pred_check_branch
      %2196 = sbr.rel (%p2194) target = $region88
    $region87: #{tpu_custom_call.1} parent=5 // pred_region
      %s2197 = ssub.s32 %s21, 2
      // Predicated region
      $region89: #{tpu_custom_call.1} parent=87 // pred_check
        %p2198 = pneg %p370
      $region90: #{tpu_custom_call.1} parent=87 // pred_check_branch
        %2200 = sbr.rel (%p2198) target = $region92
      $region91: #{tpu_custom_call.1} parent=87 // pred_region
        %p2201 = scmp.lt.s32.totalorder %s27, 1
        %s2202 = scalar_select %p2201, %s27, 1
        %s2203 = smul.addr %s2202, 8
        %s2204 = smul.addr %s2203, 8
        %s2205 = scalar_lea.vmem %s15, %s2204
      $region92: #{tpu_custom_call.1} parent=87 // pred_fallthru
        _
    $region88: #{tpu_custom_call.1} parent=5 // pred_fallthru
      _
  $region6: #{tpu_custom_call.1} parent=0 // loop_footer
    %s25 = sadd.s32 1, %s21
  $region7: #{tpu_custom_call.1} parent=0 // loop_footer_branch
    %20 = sbr.rel target = $region3
  $region8: #{tpu_custom_call.1} parent=0 // loop_exit
    _

</llo_original>
